<compile_context>
chip_gen: v6e
topology: v6e:2x2x1
jax: 0.10.0
libtpu: 0.0.40
codegen_flags: <defaults>
</compile_context>

<pallas_src>
import functools

import jax
import jax.numpy as jnp
from jax import lax
from jax.experimental import pallas as pl
from jax.experimental.pallas import tpu as pltpu

IN_FEATURES = 28 * 28   # 784, hard-coded by EvoModel.__init__
OUT_CLASSES = 10
OUT_PAD = 128           # lane-dense output tile
_MIN_SUBLANES = 8


def _round_up(x: int, m: int) -> int:
    return ((x + m - 1) // m) * m


def _tpu_mem_config():
    """Returns (vmem budget for pipeline buffers, vmem_limit_bytes, #TensorCores)."""
    cap = None
    try:
        cap = getattr(pltpu.get_tpu_info(), "vmem_capacity_bytes", None)
        if cap is not None:
            cap = int(cap)
    except Exception:
        cap = None
    if not cap or cap <= 0:
        cap = 64 << 20                       # conservative fallback (v7x physical)
    vmem_limit = int(min((cap * 3) // 4, 112 << 20))
    budget = int((vmem_limit * 2) // 3)      # headroom under the scoped limit
    num_tc = 1
    try:
        kind = jax.devices()[0].device_kind.lower()
        if "v7" in kind or "7x" in kind:
            num_tc = 2                       # megacore: keep block count even
    except Exception:
        pass
    return budget, vmem_limit, num_tc


def _evo_mlp_kernel(x_ref, w1_ref, w2_ref, o_ref):
    # x_ref : (Pb, M, K)       bf16 activations (rows on sublanes, K on lanes)
    # w1_ref: (Pb, H, K)       bf16 fc1 weights, original (out, in) layout
    # w2_ref: (Pb, O_pad, H)   bf16 fc2 weights, out dim lane-padded to 128
    # o_ref : (Pb, M, O_pad)   f32 lane-dense output tile (unmasked stores)
    pb = x_ref.shape[0]
    dn = (((1,), (1,)), ((), ()))            # contract last dims: (M,K)·(N,K) -> (M,N)

    def one_pop(p, carry):
        h = lax.dot_general(x_ref[p], w1_ref[p], dn,
                            preferred_element_type=jnp.float32)
        h = jnp.maximum(h, 0.0).astype(w2_ref.dtype)        # ReLU between fc1/fc2
        o = lax.dot_general(h, w2_ref[p], dn,
                            preferred_element_type=jnp.float32)
        o_ref[p] = o.astype(o_ref.dtype)
        return carry

    if pb <= 8:
        for p in range(pb):                  # small static unroll
            one_pop(p, 0)
    else:
        lax.fori_loop(0, pb, one_pop, 0, unroll=2)


def _fused_two_layer(x_all, w1_all, w2_all, pb, vmem_limit):
    """x_all: (Pp, M, K), w1_all: (Pp, H, K), w2_all: (Pp, Op, H) -> (Pp, M, Op)."""
    p_pad, m_pad, k = x_all.shape
    h = w1_all.shape[1]
    o_pad = w2_all.shape[1]
    num_blocks = p_pad // pb

    flops = 2 * p_pad * m_pad * (h * k + h * o_pad)
    bytes_accessed = (x_all.size * x_all.dtype.itemsize
                      + w1_all.size * w1_all.dtype.itemsize
                      + w2_all.size * w2_all.dtype.itemsize
                      + p_pad * m_pad * o_pad * 4)
    cost = pl.CostEstimate(flops=flops, transcendentals=0,
                           bytes_accessed=bytes_accessed)

    return pl.pallas_call(
        _evo_mlp_kernel,
        out_shape=jax.ShapeDtypeStruct((p_pad, m_pad, o_pad), jnp.float32),
        grid_spec=pltpu.PrefetchScalarGridSpec(
            num_scalar_prefetch=0,
            grid=(num_blocks,),
            in_specs=[
                pl.BlockSpec((pb, m_pad, k), lambda g: (g, 0, 0)),
                pl.BlockSpec((pb, h, k), lambda g: (g, 0, 0)),
                pl.BlockSpec((pb, o_pad, h), lambda g: (g, 0, 0)),
            ],
            out_specs=pl.BlockSpec((pb, m_pad, o_pad), lambda g: (g, 0, 0)),
        ),
        compiler_params=pltpu.CompilerParams(
            dimension_semantics=("parallel",),
            vmem_limit_bytes=vmem_limit),
        cost_estimate=cost,
    )(x_all, w1_all, w2_all)


def pack_evo_params(params, *, max_batch_rows=8):
    """One-time-per-generation weight packing (would live in next_generation()):
    fold current weights in as population 0, cast to bf16, pad fc2 out dim to
    128 lanes and the population axis to a whole number of kernel blocks."""
    w1, w2 = params["fc1_w"], params["fc2_w"]             # (H, 784), (10, H)
    off1, off2 = params["fc1_off"], params["fc2_off"]     # (P, H, 784), (P, 10, H)

    h, k = w1.shape
    o = w2.shape[0]
    p = off1.shape[0]
    p_total = p + 1

    m_pad = max(_round_up(max_batch_rows, _MIN_SUBLANES), _MIN_SUBLANES)
    o_pad = _round_up(max(o, 1), OUT_PAD)

    budget, vmem_limit, num_tc = _tpu_mem_config()
    # double-buffered per-population pipeline cost (bf16 x/w inputs, f32 output)
    bytes_per_pop = 2 * (2 * (m_pad * k + h * k + o_pad * h) + 4 * m_pad * o_pad)
    pb_vmem = max(1, budget // bytes_per_pop)
    nb = max(num_tc, pl.cdiv(p_total, pb_vmem))
    nb = _round_up(nb, num_tc)               # keep both v7x TensorCores balanced
    pb = pl.cdiv(p_total, nb)
    p_pad = nb * pb

    w1_all = jnp.concatenate([w1[None].astype(jnp.bfloat16),
                              off1.astype(jnp.bfloat16)], axis=0)   # (P+1, H, K)
    w2_all = jnp.concatenate([w2[None].astype(jnp.bfloat16),
                              off2.astype(jnp.bfloat16)], axis=0)   # (P+1, O, H)
    w1_all = jnp.pad(w1_all, ((0, p_pad - p_total), (0, 0), (0, 0)))
    w2_all = jnp.pad(w2_all, ((0, p_pad - p_total), (0, o_pad - o), (0, 0)))

    meta = dict(pb=int(pb), o=int(o), vmem_limit=int(vmem_limit))
    return {"w1_all": w1_all, "w2_all": w2_all}, meta


@functools.partial(jax.jit, static_argnames=("pb", "o", "vmem_limit"))
def _evo_forward_impl(x0, x1, w1_all, w2_all, *, pb, o, vmem_limit):
    b, c = x0.shape[0], x0.shape[1]
    p, bm = x1.shape[0], x1.shape[1]
    k = IN_FEATURES
    p_pad = w1_all.shape[0]

    m0, m1 = b * c, bm
    m_pad = _round_up(max(m0, m1, 1), _MIN_SUBLANES)

    # activation slab: pop 0 = current-weights path, pops 1..P = offspring paths
    x0_rows = jnp.pad(x0.reshape(1, m0, k).astype(jnp.bfloat16),
                      ((0, 0), (0, m_pad - m0), (0, 0)))
    x1_rows = jnp.pad(x1.reshape(p, m1, k).astype(jnp.bfloat16),
                      ((0, p_pad - p - 1), (0, m_pad - m1), (0, 0)))
    x_all = jnp.concatenate([x0_rows, x1_rows], axis=0)    # (p_pad, m_pad, k)

    out = _fused_two_layer(x_all, w1_all, w2_all, pb, vmem_limit)

    orig = out[0, :m0, :o].reshape(b, c, o)
    mut = out[1:1 + p, :m1, :o]
    return orig, mut


def evo_model_forward(x_list, packed, meta):
    """Mirrors EvoModel.forward on a 2-element input list [x0, x1]."""
    x0, x1 = x_list
    orig, mut = _evo_forward_impl(x0, x1, packed["w1_all"], packed["w2_all"],
                                  pb=meta["pb"], o=meta["o"],
                                  vmem_limit=meta["vmem_limit"])
    return [orig, mut]


# TODO(synk): next_generation / mate / reset are host-side evolutionary state
# updates (torch.normal mutation, fitness-weighted mating); they are not part
# of forward and are left un-kernelized (pack_evo_params stands in for the
# layout/packing part of next_generation).


if __name__ == "__main__":
    HIDDEN = 32
    B, C = 2, 1
    P = 4
    LR = 0.1

    key = jax.random.PRNGKey(0)
    k0, k1, k2, k3, k4, k5 = jax.random.split(key, 6)

    fc1_w = 0.05 * jax.random.normal(k0, (HIDDEN, IN_FEATURES), jnp.float32)
    fc2_w = 0.05 * jax.random.normal(k1, (OUT_CLASSES, HIDDEN), jnp.float32)
    fc1_off = fc1_w[None] + LR * jax.random.normal(k2, (P, HIDDEN, IN_FEATURES), jnp.float32)
    fc2_off = fc2_w[None] + LR * jax.random.normal(k3, (P, OUT_CLASSES, HIDDEN), jnp.float32)
    params = {"fc1_w": fc1_w, "fc2_w": fc2_w, "fc1_off": fc1_off, "fc2_off": fc2_off}

    x0 = jax.random.normal(k4, (B, C, 28, 28), jnp.float32)
    x1 = jax.random.normal(k5, (P, B, 28, 28), jnp.float32)

    packed, meta = pack_evo_params(params, max_batch_rows=max(B * C, B))
    orig, mut = evo_model_forward([x0, x1], packed, meta)
    orig = jax.block_until_ready(orig)
    mut = jax.block_until_ready(mut)

    # Reference with matched bf16 input rounding (f32 accumulation, as the kernel).
    def bf(a):
        return a.astype(jnp.bfloat16).astype(jnp.float32)

    x0_f, x1_f = bf(x0.reshape(B, C, -1)), bf(x1.reshape(P, B, -1))
    w1_f, w2_f = bf(fc1_w), bf(fc2_w)
    o1_f, o2_f = bf(fc1_off), bf(fc2_off)
    h0 = bf(jnp.maximum(jnp.einsum("bci,oi->bco", x0_f, w1_f), 0.0))
    orig_ref = jnp.einsum("bch,oh->bco", h0, w2_f)
    h1 = bf(jnp.maximum(jnp.einsum("pbi,poi->pbo", x1_f, o1_f), 0.0))
    mut_ref = jnp.einsum("pbh,poh->pbo", h1, o2_f)

    # Pure-f32 reference (PyTorch semantics), loose tolerance for the bf16 cast.
    h0_32 = jnp.maximum(jnp.einsum("bci,oi->bco", x0.reshape(B, C, -1), fc1_w), 0.0)
    orig_ref32 = jnp.einsum("bch,oh->bco", h0_32, fc2_w)
    h1_32 = jnp.maximum(jnp.einsum("pbi,poi->pbo", x1.reshape(P, B, -1), fc1_off), 0.0)
    mut_ref32 = jnp.einsum("pbh,poh->pbo", h1_32, fc2_off)

    assert orig.shape == (B, C, OUT_CLASSES)
    assert mut.shape == (P, B, OUT_CLASSES)
    assert jnp.allclose(orig, orig_ref, atol=1e-2, rtol=1e-2)
    assert jnp.allclose(mut, mut_ref, atol=1e-2, rtol=1e-2)
    assert jnp.allclose(orig, orig_ref32, atol=1e-1, rtol=1e-1)
    assert jnp.allclose(mut, mut_ref32, atol=1e-1, rtol=1e-1)

    print("KERNEL_OK")
</pallas_src>

<mosaic_0001>
module attributes {stable_mosaic.version = 11 : i64} {
  func.func @_evo_mlp_kernel(%arg0: i32, %arg1: memref<5x8x784xbf16, #tpu.memory_space<vmem>>, %arg2: memref<5x32x784xbf16, #tpu.memory_space<vmem>>, %arg3: memref<5x128x32xbf16, #tpu.memory_space<vmem>>, %arg4: memref<5x8x128xf32, #tpu.memory_space<vmem>>) attributes {dimension_semantics = [#tpu.dimension_semantics<parallel>], iteration_bounds = array<i64: 1>, scalar_prefetch = 0 : i64, scratch_operands = 0 : i64, tpu.core_type = #tpu.core_type<tc>, window_params = [{transform_indices = @transform_0, window_bounds = array<i64: 5, 8, 784>}, {transform_indices = @transform_1, window_bounds = array<i64: 5, 32, 784>}, {transform_indices = @transform_2, window_bounds = array<i64: 5, 128, 32>}, {transform_indices = @transform_3, window_bounds = array<i64: 5, 8, 128>}]} {
    %c0 = arith.constant 0 : index
    %c0_0 = arith.constant 0 : index
    %c0_1 = arith.constant 0 : index
    %0 = vector.load %arg1[%c0, %c0_0, %c0_1] : memref<5x8x784xbf16, #tpu.memory_space<vmem>>, vector<1x8x784xbf16>
    %1 = vector.shape_cast %0 : vector<1x8x784xbf16> to vector<8x784xbf16>
    %c0_2 = arith.constant 0 : index
    %c0_3 = arith.constant 0 : index
    %c0_4 = arith.constant 0 : index
    %2 = vector.load %arg2[%c0_2, %c0_3, %c0_4] : memref<5x32x784xbf16, #tpu.memory_space<vmem>>, vector<1x32x784xbf16>
    %3 = vector.shape_cast %2 : vector<1x32x784xbf16> to vector<32x784xbf16>
    %cst = arith.constant dense<0.000000e+00> : vector<8x32xf32>
    %4 = tpu.matmul %1, %3, %cst {dimension_numbers = #tpu.dot_dimension_numbers<[1], [1], [0], [0], [0, 0, 1, 0], [], []>} : vector<8x784xbf16>, vector<32x784xbf16>, vector<8x32xf32> -> vector<8x32xf32>
    %cst_5 = arith.constant 0.000000e+00 : f32
    %5 = vector.broadcast %cst_5 : f32 to vector<8x32xf32>
    %6 = arith.maximumf %4, %5 : vector<8x32xf32>
    %7 = arith.truncf %6 : vector<8x32xf32> to vector<8x32xbf16>
    %c0_6 = arith.constant 0 : index
    %c0_7 = arith.constant 0 : index
    %c0_8 = arith.constant 0 : index
    %8 = vector.load %arg3[%c0_6, %c0_7, %c0_8] : memref<5x128x32xbf16, #tpu.memory_space<vmem>>, vector<1x128x32xbf16>
    %9 = vector.shape_cast %8 : vector<1x128x32xbf16> to vector<128x32xbf16>
    %cst_9 = arith.constant dense<0.000000e+00> : vector<8x128xf32>
    %10 = tpu.matmul %7, %9, %cst_9 {dimension_numbers = #tpu.dot_dimension_numbers<[1], [1], [0], [0], [0, 0, 1, 0], [], []>} : vector<8x32xbf16>, vector<128x32xbf16>, vector<8x128xf32> -> vector<8x128xf32>
    %c0_10 = arith.constant 0 : index
    %c0_11 = arith.constant 0 : index
    %c0_12 = arith.constant 0 : index
    %11 = vector.load %arg4[%c0_10, %c0_11, %c0_12] : memref<5x8x128xf32, #tpu.memory_space<vmem>>, vector<1x8x128xf32>
    %12 = vector.shape_cast %11 : vector<1x8x128xf32> to vector<8x128xf32>
    %13 = vector.shape_cast %10 : vector<8x128xf32> to vector<1x8x128xf32>
    tpu.vector_store %arg4[%c0_10, %c0_11, %c0_12], %13 {strides = array<i32>} : memref<5x8x128xf32, #tpu.memory_space<vmem>>, vector<1x8x128xf32>,
    %c1 = arith.constant 1 : index
    %c0_13 = arith.constant 0 : index
    %c0_14 = arith.constant 0 : index
    %14 = vector.load %arg1[%c1, %c0_13, %c0_14] : memref<5x8x784xbf16, #tpu.memory_space<vmem>>, vector<1x8x784xbf16>
    %15 = vector.shape_cast %14 : vector<1x8x784xbf16> to vector<8x784xbf16>
    %c1_15 = arith.constant 1 : index
    %c0_16 = arith.constant 0 : index
    %c0_17 = arith.constant 0 : index
    %16 = vector.load %arg2[%c1_15, %c0_16, %c0_17] : memref<5x32x784xbf16, #tpu.memory_space<vmem>>, vector<1x32x784xbf16>
    %17 = vector.shape_cast %16 : vector<1x32x784xbf16> to vector<32x784xbf16>
    %cst_18 = arith.constant dense<0.000000e+00> : vector<8x32xf32>
    %18 = tpu.matmul %15, %17, %cst_18 {dimension_numbers = #tpu.dot_dimension_numbers<[1], [1], [0], [0], [0, 0, 1, 0], [], []>} : vector<8x784xbf16>, vector<32x784xbf16>, vector<8x32xf32> -> vector<8x32xf32>
    %cst_19 = arith.constant 0.000000e+00 : f32
    %19 = vector.broadcast %cst_19 : f32 to vector<8x32xf32>
    %20 = arith.maximumf %18, %19 : vector<8x32xf32>
    %21 = arith.truncf %20 : vector<8x32xf32> to vector<8x32xbf16>
    %c1_20 = arith.constant 1 : index
    %c0_21 = arith.constant 0 : index
    %c0_22 = arith.constant 0 : index
    %22 = vector.load %arg3[%c1_20, %c0_21, %c0_22] : memref<5x128x32xbf16, #tpu.memory_space<vmem>>, vector<1x128x32xbf16>
    %23 = vector.shape_cast %22 : vector<1x128x32xbf16> to vector<128x32xbf16>
    %cst_23 = arith.constant dense<0.000000e+00> : vector<8x128xf32>
    %24 = tpu.matmul %21, %23, %cst_23 {dimension_numbers = #tpu.dot_dimension_numbers<[1], [1], [0], [0], [0, 0, 1, 0], [], []>} : vector<8x32xbf16>, vector<128x32xbf16>, vector<8x128xf32> -> vector<8x128xf32>
    %c1_24 = arith.constant 1 : index
    %c0_25 = arith.constant 0 : index
    %c0_26 = arith.constant 0 : index
    %25 = vector.load %arg4[%c1_24, %c0_25, %c0_26] : memref<5x8x128xf32, #tpu.memory_space<vmem>>, vector<1x8x128xf32>
    %26 = vector.shape_cast %25 : vector<1x8x128xf32> to vector<8x128xf32>
    %27 = vector.shape_cast %24 : vector<8x128xf32> to vector<1x8x128xf32>
    tpu.vector_store %arg4[%c1_24, %c0_25, %c0_26], %27 {strides = array<i32>} : memref<5x8x128xf32, #tpu.memory_space<vmem>>, vector<1x8x128xf32>,
    %c2 = arith.constant 2 : index
    %c0_27 = arith.constant 0 : index
    %c0_28 = arith.constant 0 : index
    %28 = vector.load %arg1[%c2, %c0_27, %c0_28] : memref<5x8x784xbf16, #tpu.memory_space<vmem>>, vector<1x8x784xbf16>
    %29 = vector.shape_cast %28 : vector<1x8x784xbf16> to vector<8x784xbf16>
    %c2_29 = arith.constant 2 : index
    %c0_30 = arith.constant 0 : index
    %c0_31 = arith.constant 0 : index
    %30 = vector.load %arg2[%c2_29, %c0_30, %c0_31] : memref<5x32x784xbf16, #tpu.memory_space<vmem>>, vector<1x32x784xbf16>
    %31 = vector.shape_cast %30 : vector<1x32x784xbf16> to vector<32x784xbf16>
    %cst_32 = arith.constant dense<0.000000e+00> : vector<8x32xf32>
    %32 = tpu.matmul %29, %31, %cst_32 {dimension_numbers = #tpu.dot_dimension_numbers<[1], [1], [0], [0], [0, 0, 1, 0], [], []>} : vector<8x784xbf16>, vector<32x784xbf16>, vector<8x32xf32> -> vector<8x32xf32>
    %cst_33 = arith.constant 0.000000e+00 : f32
    %33 = vector.broadcast %cst_33 : f32 to vector<8x32xf32>
    %34 = arith.maximumf %32, %33 : vector<8x32xf32>
    %35 = arith.truncf %34 : vector<8x32xf32> to vector<8x32xbf16>
    %c2_34 = arith.constant 2 : index
    %c0_35 = arith.constant 0 : index
    %c0_36 = arith.constant 0 : index
    %36 = vector.load %arg3[%c2_34, %c0_35, %c0_36] : memref<5x128x32xbf16, #tpu.memory_space<vmem>>, vector<1x128x32xbf16>
    %37 = vector.shape_cast %36 : vector<1x128x32xbf16> to vector<128x32xbf16>
    %cst_37 = arith.constant dense<0.000000e+00> : vector<8x128xf32>
    %38 = tpu.matmul %35, %37, %cst_37 {dimension_numbers = #tpu.dot_dimension_numbers<[1], [1], [0], [0], [0, 0, 1, 0], [], []>} : vector<8x32xbf16>, vector<128x32xbf16>, vector<8x128xf32> -> vector<8x128xf32>
    %c2_38 = arith.constant 2 : index
    %c0_39 = arith.constant 0 : index
    %c0_40 = arith.constant 0 : index
    %39 = vector.load %arg4[%c2_38, %c0_39, %c0_40] : memref<5x8x128xf32, #tpu.memory_space<vmem>>, vector<1x8x128xf32>
    %40 = vector.shape_cast %39 : vector<1x8x128xf32> to vector<8x128xf32>
    %41 = vector.shape_cast %38 : vector<8x128xf32> to vector<1x8x128xf32>
    tpu.vector_store %arg4[%c2_38, %c0_39, %c0_40], %41 {strides = array<i32>} : memref<5x8x128xf32, #tpu.memory_space<vmem>>, vector<1x8x128xf32>,
    %c3 = arith.constant 3 : index
    %c0_41 = arith.constant 0 : index
    %c0_42 = arith.constant 0 : index
    %42 = vector.load %arg1[%c3, %c0_41, %c0_42] : memref<5x8x784xbf16, #tpu.memory_space<vmem>>, vector<1x8x784xbf16>
    %43 = vector.shape_cast %42 : vector<1x8x784xbf16> to vector<8x784xbf16>
    %c3_43 = arith.constant 3 : index
    %c0_44 = arith.constant 0 : index
    %c0_45 = arith.constant 0 : index
    %44 = vector.load %arg2[%c3_43, %c0_44, %c0_45] : memref<5x32x784xbf16, #tpu.memory_space<vmem>>, vector<1x32x784xbf16>
    %45 = vector.shape_cast %44 : vector<1x32x784xbf16> to vector<32x784xbf16>
    %cst_46 = arith.constant dense<0.000000e+00> : vector<8x32xf32>
    %46 = tpu.matmul %43, %45, %cst_46 {dimension_numbers = #tpu.dot_dimension_numbers<[1], [1], [0], [0], [0, 0, 1, 0], [], []>} : vector<8x784xbf16>, vector<32x784xbf16>, vector<8x32xf32> -> vector<8x32xf32>
    %cst_47 = arith.constant 0.000000e+00 : f32
    %47 = vector.broadcast %cst_47 : f32 to vector<8x32xf32>
    %48 = arith.maximumf %46, %47 : vector<8x32xf32>
    %49 = arith.truncf %48 : vector<8x32xf32> to vector<8x32xbf16>
    %c3_48 = arith.constant 3 : index
    %c0_49 = arith.constant 0 : index
    %c0_50 = arith.constant 0 : index
    %50 = vector.load %arg3[%c3_48, %c0_49, %c0_50] : memref<5x128x32xbf16, #tpu.memory_space<vmem>>, vector<1x128x32xbf16>
    %51 = vector.shape_cast %50 : vector<1x128x32xbf16> to vector<128x32xbf16>
    %cst_51 = arith.constant dense<0.000000e+00> : vector<8x128xf32>
    %52 = tpu.matmul %49, %51, %cst_51 {dimension_numbers = #tpu.dot_dimension_numbers<[1], [1], [0], [0], [0, 0, 1, 0], [], []>} : vector<8x32xbf16>, vector<128x32xbf16>, vector<8x128xf32> -> vector<8x128xf32>
    %c3_52 = arith.constant 3 : index
    %c0_53 = arith.constant 0 : index
    %c0_54 = arith.constant 0 : index
    %53 = vector.load %arg4[%c3_52, %c0_53, %c0_54] : memref<5x8x128xf32, #tpu.memory_space<vmem>>, vector<1x8x128xf32>
    %54 = vector.shape_cast %53 : vector<1x8x128xf32> to vector<8x128xf32>
    %55 = vector.shape_cast %52 : vector<8x128xf32> to vector<1x8x128xf32>
    tpu.vector_store %arg4[%c3_52, %c0_53, %c0_54], %55 {strides = array<i32>} : memref<5x8x128xf32, #tpu.memory_space<vmem>>, vector<1x8x128xf32>,
    %c4 = arith.constant 4 : index
    %c0_55 = arith.constant 0 : index
    %c0_56 = arith.constant 0 : index
    %56 = vector.load %arg1[%c4, %c0_55, %c0_56] : memref<5x8x784xbf16, #tpu.memory_space<vmem>>, vector<1x8x784xbf16>
    %57 = vector.shape_cast %56 : vector<1x8x784xbf16> to vector<8x784xbf16>
    %c4_57 = arith.constant 4 : index
    %c0_58 = arith.constant 0 : index
    %c0_59 = arith.constant 0 : index
    %58 = vector.load %arg2[%c4_57, %c0_58, %c0_59] : memref<5x32x784xbf16, #tpu.memory_space<vmem>>, vector<1x32x784xbf16>
    %59 = vector.shape_cast %58 : vector<1x32x784xbf16> to vector<32x784xbf16>
    %cst_60 = arith.constant dense<0.000000e+00> : vector<8x32xf32>
    %60 = tpu.matmul %57, %59, %cst_60 {dimension_numbers = #tpu.dot_dimension_numbers<[1], [1], [0], [0], [0, 0, 1, 0], [], []>} : vector<8x784xbf16>, vector<32x784xbf16>, vector<8x32xf32> -> vector<8x32xf32>
    %cst_61 = arith.constant 0.000000e+00 : f32
    %61 = vector.broadcast %cst_61 : f32 to vector<8x32xf32>
    %62 = arith.maximumf %60, %61 : vector<8x32xf32>
    %63 = arith.truncf %62 : vector<8x32xf32> to vector<8x32xbf16>
    %c4_62 = arith.constant 4 : index
    %c0_63 = arith.constant 0 : index
    %c0_64 = arith.constant 0 : index
    %64 = vector.load %arg3[%c4_62, %c0_63, %c0_64] : memref<5x128x32xbf16, #tpu.memory_space<vmem>>, vector<1x128x32xbf16>
    %65 = vector.shape_cast %64 : vector<1x128x32xbf16> to vector<128x32xbf16>
    %cst_65 = arith.constant dense<0.000000e+00> : vector<8x128xf32>
    %66 = tpu.matmul %63, %65, %cst_65 {dimension_numbers = #tpu.dot_dimension_numbers<[1], [1], [0], [0], [0, 0, 1, 0], [], []>} : vector<8x32xbf16>, vector<128x32xbf16>, vector<8x128xf32> -> vector<8x128xf32>
    %c4_66 = arith.constant 4 : index
    %c0_67 = arith.constant 0 : index
    %c0_68 = arith.constant 0 : index
    %67 = vector.load %arg4[%c4_66, %c0_67, %c0_68] : memref<5x8x128xf32, #tpu.memory_space<vmem>>, vector<1x8x128xf32>
    %68 = vector.shape_cast %67 : vector<1x8x128xf32> to vector<8x128xf32>
    %69 = vector.shape_cast %66 : vector<8x128xf32> to vector<1x8x128xf32>
    tpu.vector_store %arg4[%c4_66, %c0_67, %c0_68], %69 {strides = array<i32>} : memref<5x8x128xf32, #tpu.memory_space<vmem>>, vector<1x8x128xf32>,
    return
  }
  func.func @transform_0(%arg0: i32) -> (i32, i32, i32) {
    %c0_i32 = arith.constant 0 : i32
    %c0_i32_0 = arith.constant 0 : i32
    %c0_i32_1 = arith.constant 0 : i32
    return %arg0, %c0_i32, %c0_i32_0 : i32, i32, i32
  }
  func.func @transform_1(%arg0: i32) -> (i32, i32, i32) {
    %c0_i32 = arith.constant 0 : i32
    %c0_i32_0 = arith.constant 0 : i32
    %c0_i32_1 = arith.constant 0 : i32
    return %arg0, %c0_i32, %c0_i32_0 : i32, i32, i32
  }
  func.func @transform_2(%arg0: i32) -> (i32, i32, i32) {
    %c0_i32 = arith.constant 0 : i32
    %c0_i32_0 = arith.constant 0 : i32
    %c0_i32_1 = arith.constant 0 : i32
    return %arg0, %c0_i32, %c0_i32_0 : i32, i32, i32
  }
  func.func @transform_3(%arg0: i32) -> (i32, i32, i32) {
    %c0_i32 = arith.constant 0 : i32
    %c0_i32_0 = arith.constant 0 : i32
    %c0_i32_1 = arith.constant 0 : i32
    return %arg0, %c0_i32, %c0_i32_0 : i32, i32, i32
  }
}

</mosaic_0001>

<llo_original>
// kernel: _evo_forward_impl.1
$region0: #{_evo_forward_impl.1}
  #allocation0 [shape = 'u32[]', space=smem, size = 0x4, offset = 0x4, fixed_abs, tag = 'smem constant byte address 0x4 - core index']
  #allocation1 [shape = 'u32[144,128]{1,0:T(1,128)}', space=vmem, size = 0x12000, scoped, tag = 'internal scratch']
  %s0 = inlined_call_operand.vmem [shape: bf16[5,8,784], index: 0, kind: input, shape index: {}]
  %s1 = inlined_call_operand.vmem [shape: bf16[5,32,784], index: 1, kind: input, shape index: {}]
  %s2 = inlined_call_operand.vmem [shape: bf16[5,128,32], index: 2, kind: input, shape index: {}]
  %s3 = inlined_call_operand.vmem [shape: f32[5,8,128], index: 3, kind: output, shape index: {}]
  %s4 = sld [smem:[#allocation0]]
  $region22: #{_evo_forward_impl.1} parent=0
    _
  %s6 = ssub.s32 1, %s4
  %s7 = scalar_select 0, %s6, %s4
  // Predicated region
  $region2: #{_evo_forward_impl.1} parent=0 // pred_check
    _
  $region3: #{_evo_forward_impl.1} parent=0 // pred_check_branch
    %9 = sbr.rel (0) target = $region5
  $region4: #{_evo_forward_impl.1} parent=0 // pred_region
    _
  $region5: #{_evo_forward_impl.1} parent=0 // pred_fallthru
    _
  // Predicated region
  $region6: #{_evo_forward_impl.1} parent=0 // pred_check
    _
  $region7: #{_evo_forward_impl.1} parent=0 // pred_check_branch
    %11 = sbr.rel (0) target = $region9
  $region8: #{_evo_forward_impl.1} parent=0 // pred_region
    _
  $region9: #{_evo_forward_impl.1} parent=0 // pred_fallthru
    _
  // Predicated region
  $region10: #{_evo_forward_impl.1} parent=0 // pred_check
    _
  $region11: #{_evo_forward_impl.1} parent=0 // pred_check_branch
    %13 = sbr.rel (0) target = $region13
  $region12: #{_evo_forward_impl.1} parent=0 // pred_region
    _
  $region13: #{_evo_forward_impl.1} parent=0 // pred_fallthru
    _
  %v15 = vld [vmem:[%s0] sm:$0xff]
  %v16 = vld [vmem:[%s0 + $0x8] sm:$0xff]
  %v17 = vld [vmem:[%s0 + $0x10] sm:$0xff]
  %v18 = vld [vmem:[%s0 + $0x18] sm:$0xf]
  %v19 = vld [vmem:[%s1] sm:$0xff]
  %v20 = vld [vmem:[%s1 + $0x8] sm:$0xff]
  %v21 = vld [vmem:[%s1 + $0x10] sm:$0xff]
  %v22 = vld [vmem:[%s1 + $0x18] sm:$0xf]
  %v23 = vld [vmem:[%s1 + $0x1c] sm:$0xff]
  %v24 = vld [vmem:[%s1 + $0x24] sm:$0xff]
  %v25 = vld [vmem:[%s1 + $0x2c] sm:$0xff]
  %v26 = vld [vmem:[%s1 + $0x34] sm:$0xf]
  %v27 = vld [vmem:[%s1 + $0x38] sm:$0xff]
  %v28 = vld [vmem:[%s1 + $0x40] sm:$0xff]
  %v29 = vld [vmem:[%s1 + $0x48] sm:$0xff]
  %v30 = vld [vmem:[%s1 + $0x50] sm:$0xf]
  %v31 = vld [vmem:[%s1 + $0x54] sm:$0xff]
  %v32 = vld [vmem:[%s1 + $0x5c] sm:$0xff]
  %v33 = vld [vmem:[%s1 + $0x64] sm:$0xff]
  %v34 = vld [vmem:[%s1 + $0x6c] sm:$0xf]
  %v39 = vunpack.c.l.b16 %v15
  %v40 = vunpack.c.h.b16 %v15
  %v41 = vunpack.c.l.b16 %v16
  %v42 = vunpack.c.h.b16 %v16
  %v43 = vunpack.c.l.b16 %v17
  %v44 = vunpack.c.h.b16 %v17
  %v45 = vunpack.c.l.b16 %v18
  %v46 = vpack.c.b16 %v39, %v39
  %v47 = vpack.c.b16 %v40, %v40
  %v48 = vpack.c.b16 %v41, %v41
  %v49 = vpack.c.b16 %v42, %v42
  %v50 = vpack.c.b16 %v43, %v43
  %v51 = vpack.c.b16 %v44, %v44
  %v52 = vpack.c.b16 %v45, %v45
  %v75 = vunpack.c.l.b16 %v19
  %v76 = vunpack.c.h.b16 %v19
  %v77 = vunpack.c.l.b16 %v20
  %v78 = vunpack.c.h.b16 %v20
  %v79 = vunpack.c.l.b16 %v21
  %v80 = vunpack.c.h.b16 %v21
  %v81 = vunpack.c.l.b16 %v22
  %v82 = vunpack.c.l.b16 %v23
  %v83 = vunpack.c.h.b16 %v23
  %v84 = vunpack.c.l.b16 %v24
  %v85 = vunpack.c.h.b16 %v24
  %v86 = vunpack.c.l.b16 %v25
  %v87 = vunpack.c.h.b16 %v25
  %v88 = vunpack.c.l.b16 %v26
  %v89 = vunpack.c.l.b16 %v27
  %v90 = vunpack.c.h.b16 %v27
  %v91 = vunpack.c.l.b16 %v28
  %v92 = vunpack.c.h.b16 %v28
  %v93 = vunpack.c.l.b16 %v29
  %v94 = vunpack.c.h.b16 %v29
  %v95 = vunpack.c.l.b16 %v30
  %v96 = vunpack.c.l.b16 %v31
  %v97 = vunpack.c.h.b16 %v31
  %v98 = vunpack.c.l.b16 %v32
  %v99 = vunpack.c.h.b16 %v32
  %v100 = vunpack.c.l.b16 %v33
  %v101 = vunpack.c.h.b16 %v33
  %v102 = vunpack.c.l.b16 %v34
  %v103 = vpack.c.b16 %v82, %v75
  %v104 = vpack.c.b16 %v83, %v76
  %v105 = vpack.c.b16 %v84, %v77
  %v106 = vpack.c.b16 %v85, %v78
  %v107 = vpack.c.b16 %v86, %v79
  %v108 = vpack.c.b16 %v87, %v80
  %v109 = vpack.c.b16 %v88, %v81
  %v110 = vpack.c.b16 %v96, %v89
  %v111 = vpack.c.b16 %v97, %v90
  %v112 = vpack.c.b16 %v98, %v91
  %v113 = vpack.c.b16 %v99, %v92
  %v114 = vpack.c.b16 %v100, %v93
  %v115 = vpack.c.b16 %v101, %v94
  %v116 = vpack.c.b16 %v102, %v95
  %vm129 = vcmask 130048
  %v131 = vsel %vm129, %v52, 0
  %v134 = vsel %vm129, %v109, 0
  %v137 = vsel %vm129, %v116, 0
  %139 = vmatprep.subr.bf16.mxu0 0
  %140 = vmatpush1.bf16.xpose.msra.mxu0 0
  %141 = vmatprep.subr.bf16.mxu0 0
  %142 = vmatpush1.bf16.xpose.msra.mxu0 0
  %143 = vmatprep.subr.bf16.mxu0 0
  %144 = vmatpush1.bf16.xpose.msra.mxu0 0
  %145 = vmatprep.subr.bf16.mxu0 0
  %146 = vmatpush1.bf16.xpose.msra.mxu0 0
  %147 = vmatprep.subr.bf16.mxu0 0
  %148 = vmatpush1.bf16.xpose.msra.mxu0 0
  %149 = vmatprep.subr.bf16.mxu0 0
  %150 = vmatpush1.bf16.xpose.msra.mxu0 0
  %151 = vmatprep.subr.bf16.mxu0 %v111
  %152 = vmatpush1.bf16.xpose.msra.mxu0 %v110
  %153 = vmatprep.subr.bf16.mxu0 %v104
  %154 = vmatpush1.bf16.xpose.msra.mxu0 %v103
  %155 = vmatprep.subr.bf16.mxu0 0
  %156 = vmatpush2.bf16.xpose.msra.mxu0 0
  %157 = vmatprep.subr.bf16.mxu0 0
  %158 = vmatpush2.bf16.xpose.msra.mxu0 0
  %159 = vmatprep.subr.bf16.mxu0 0
  %160 = vmatpush2.bf16.xpose.msra.mxu0 0
  %161 = vmatprep.subr.bf16.mxu0 0
  %162 = vmatpush2.bf16.xpose.msra.mxu0 0
  %163 = vmatprep.subr.bf16.mxu0 0
  %164 = vmatpush2.bf16.xpose.msra.mxu0 0
  %165 = vmatprep.subr.bf16.mxu0 0
  %166 = vmatpush2.bf16.xpose.msra.mxu0 0
  %167 = vmatprep.subr.bf16.mxu0 0
  %168 = vmatpush2.bf16.xpose.msra.mxu0 0
  %169 = vmatprep.subr.bf16.mxu0 0
  %170 = vmatpush2.bf16.xpose.msra.mxu0 0
  %171 = vmatprep.mubr.bf16.mxu0 %v47
  %172 = vmatmul.mubr.bf16.gmra.mxu0 %v46
  %v173 = vpop.f32.mrf.mxu0
  %v174 = vadd.f32 0.0, %v173
  %v175 = vpop.f32.mrf.mxu0
  %v176 = vpop.f32.mrf.mxu0
  %v177 = vpop.f32.mrf.mxu0
  %178 = vdwg.mxu0
  %179 = vmatprep.subr.bf16.mxu0 0
  %180 = vmatpush1.bf16.xpose.msra.mxu0 0
  %181 = vmatprep.subr.bf16.mxu0 0
  %182 = vmatpush1.bf16.xpose.msra.mxu0 0
  %183 = vmatprep.subr.bf16.mxu0 0
  %184 = vmatpush1.bf16.xpose.msra.mxu0 0
  %185 = vmatprep.subr.bf16.mxu0 0
  %186 = vmatpush1.bf16.xpose.msra.mxu0 0
  %187 = vmatprep.subr.bf16.mxu0 0
  %188 = vmatpush1.bf16.xpose.msra.mxu0 0
  %189 = vmatprep.subr.bf16.mxu0 0
  %190 = vmatpush1.bf16.xpose.msra.mxu0 0
  %191 = vmatprep.subr.bf16.mxu0 %v113
  %192 = vmatpush1.bf16.xpose.msra.mxu0 %v112
  %193 = vmatprep.subr.bf16.mxu0 %v106
  %194 = vmatpush1.bf16.xpose.msra.mxu0 %v105
  %195 = vmatprep.subr.bf16.mxu0 0
  %196 = vmatpush2.bf16.xpose.msra.mxu0 0
  %197 = vmatprep.subr.bf16.mxu0 0
  %198 = vmatpush2.bf16.xpose.msra.mxu0 0
  %199 = vmatprep.subr.bf16.mxu0 0
  %200 = vmatpush2.bf16.xpose.msra.mxu0 0
  %201 = vmatprep.subr.bf16.mxu0 0
  %202 = vmatpush2.bf16.xpose.msra.mxu0 0
  %203 = vmatprep.subr.bf16.mxu0 0
  %204 = vmatpush2.bf16.xpose.msra.mxu0 0
  %205 = vmatprep.subr.bf16.mxu0 0
  %206 = vmatpush2.bf16.xpose.msra.mxu0 0
  %207 = vmatprep.subr.bf16.mxu0 0
  %208 = vmatpush2.bf16.xpose.msra.mxu0 0
  %209 = vmatprep.subr.bf16.mxu0 0
  %210 = vmatpush2.bf16.xpose.msra.mxu0 0
  %211 = vmatprep.mubr.bf16.mxu0 %v49
  %212 = vmatmul.mubr.bf16.gmra.mxu0 %v48
  %v213 = vpop.f32.mrf.mxu0
  %v214 = vadd.f32 %v174, %v213
  %v215 = vpop.f32.mrf.mxu0
  %v216 = vpop.f32.mrf.mxu0
  %v217 = vpop.f32.mrf.mxu0
  %218 = vdwg.mxu0
  %219 = vmatprep.subr.bf16.mxu0 0
  %220 = vmatpush1.bf16.xpose.msra.mxu0 0
  %221 = vmatprep.subr.bf16.mxu0 0
  %222 = vmatpush1.bf16.xpose.msra.mxu0 0
  %223 = vmatprep.subr.bf16.mxu0 0
  %224 = vmatpush1.bf16.xpose.msra.mxu0 0
  %225 = vmatprep.subr.bf16.mxu0 0
  %226 = vmatpush1.bf16.xpose.msra.mxu0 0
  %227 = vmatprep.subr.bf16.mxu0 0
  %228 = vmatpush1.bf16.xpose.msra.mxu0 0
  %229 = vmatprep.subr.bf16.mxu0 0
  %230 = vmatpush1.bf16.xpose.msra.mxu0 0
  %231 = vmatprep.subr.bf16.mxu0 %v115
  %232 = vmatpush1.bf16.xpose.msra.mxu0 %v114
  %233 = vmatprep.subr.bf16.mxu0 %v108
  %234 = vmatpush1.bf16.xpose.msra.mxu0 %v107
  %235 = vmatprep.subr.bf16.mxu0 0
  %236 = vmatpush2.bf16.xpose.msra.mxu0 0
  %237 = vmatprep.subr.bf16.mxu0 0
  %238 = vmatpush2.bf16.xpose.msra.mxu0 0
  %239 = vmatprep.subr.bf16.mxu0 0
  %240 = vmatpush2.bf16.xpose.msra.mxu0 0
  %241 = vmatprep.subr.bf16.mxu0 0
  %242 = vmatpush2.bf16.xpose.msra.mxu0 0
  %243 = vmatprep.subr.bf16.mxu0 0
  %244 = vmatpush2.bf16.xpose.msra.mxu0 0
  %245 = vmatprep.subr.bf16.mxu0 0
  %246 = vmatpush2.bf16.xpose.msra.mxu0 0
  %247 = vmatprep.subr.bf16.mxu0 0
  %248 = vmatpush2.bf16.xpose.msra.mxu0 0
  %249 = vmatprep.subr.bf16.mxu0 0
  %250 = vmatpush2.bf16.xpose.msra.mxu0 0
  %251 = vmatprep.mubr.bf16.mxu0 %v51
  %252 = vmatmul.mubr.bf16.gmra.mxu0 %v50
  %v253 = vpop.f32.mrf.mxu0
  %v254 = vadd.f32 %v214, %v253
  %v255 = vpop.f32.mrf.mxu0
  %v256 = vpop.f32.mrf.mxu0
  %v257 = vpop.f32.mrf.mxu0
  %258 = vdwg.mxu0
  %259 = vmatprep.subr.bf16.mxu0 0
  %260 = vmatpush1.bf16.xpose.msra.mxu0 0
  %261 = vmatprep.subr.bf16.mxu0 0
  %262 = vmatpush1.bf16.xpose.msra.mxu0 0
  %263 = vmatprep.subr.bf16.mxu0 0
  %264 = vmatpush1.bf16.xpose.msra.mxu0 0
  %265 = vmatprep.subr.bf16.mxu0 0
  %266 = vmatpush1.bf16.xpose.msra.mxu0 0
  %267 = vmatprep.subr.bf16.mxu0 0
  %268 = vmatpush1.bf16.xpose.msra.mxu0 0
  %269 = vmatprep.subr.bf16.mxu0 0
  %270 = vmatpush1.bf16.xpose.msra.mxu0 0
  %271 = vmatprep.subr.bf16.mxu0 0
  %272 = vmatpush1.bf16.xpose.msra.mxu0 %v137
  %273 = vmatprep.subr.bf16.mxu0 0
  %274 = vmatpush1.bf16.xpose.msra.mxu0 %v134
  %275 = vmatprep.subr.bf16.mxu0 0
  %276 = vmatpush2.bf16.xpose.msra.mxu0 0
  %277 = vmatprep.subr.bf16.mxu0 0
  %278 = vmatpush2.bf16.xpose.msra.mxu0 0
  %279 = vmatprep.subr.bf16.mxu0 0
  %280 = vmatpush2.bf16.xpose.msra.mxu0 0
  %281 = vmatprep.subr.bf16.mxu0 0
  %282 = vmatpush2.bf16.xpose.msra.mxu0 0
  %283 = vmatprep.subr.bf16.mxu0 0
  %284 = vmatpush2.bf16.xpose.msra.mxu0 0
  %285 = vmatprep.subr.bf16.mxu0 0
  %286 = vmatpush2.bf16.xpose.msra.mxu0 0
  %287 = vmatprep.subr.bf16.mxu0 0
  %288 = vmatpush2.bf16.xpose.msra.mxu0 0
  %289 = vmatprep.subr.bf16.mxu0 0
  %290 = vmatpush2.bf16.xpose.msra.mxu0 0
  %291 = vmatprep.mubr.bf16.mxu0 0
  %292 = vmatmul.mubr.bf16.gmra.mxu0 %v131
  %v293 = vpop.f32.mrf.mxu0
  %v294 = vadd.f32 %v254, %v293
  %v295 = vpop.f32.mrf.mxu0
  %v296 = vpop.f32.mrf.mxu0
  %v297 = vpop.f32.mrf.mxu0
  %298 = vdwg.mxu0
  %v299 = vmax.f32 %v294, 0.0
  %v300 = vpack.c.bf16 %v299, %v299
  %v301 = vld [vmem:[%s2] sm:$0xf]
  %v302 = vld [vmem:[%s2 + $0x4] sm:$0xf]
  %v303 = vld [vmem:[%s2 + $0x8] sm:$0xf]
  %v304 = vld [vmem:[%s2 + $0xc] sm:$0xf]
  %v305 = vld [vmem:[%s2 + $0x10] sm:$0xf]
  %v306 = vld [vmem:[%s2 + $0x14] sm:$0xf]
  %v307 = vld [vmem:[%s2 + $0x18] sm:$0xf]
  %v308 = vld [vmem:[%s2 + $0x1c] sm:$0xf]
  %v309 = vld [vmem:[%s2 + $0x20] sm:$0xf]
  %v310 = vld [vmem:[%s2 + $0x24] sm:$0xf]
  %v311 = vld [vmem:[%s2 + $0x28] sm:$0xf]
  %v312 = vld [vmem:[%s2 + $0x2c] sm:$0xf]
  %v313 = vld [vmem:[%s2 + $0x30] sm:$0xf]
  %v314 = vld [vmem:[%s2 + $0x34] sm:$0xf]
  %v315 = vld [vmem:[%s2 + $0x38] sm:$0xf]
  %v316 = vld [vmem:[%s2 + $0x3c] sm:$0xf]
  %v333 = vunpack.c.l.b16 %v301
  %v334 = vunpack.c.l.b16 %v302
  %v335 = vunpack.c.l.b16 %v303
  %v336 = vunpack.c.l.b16 %v304
  %v337 = vunpack.c.l.b16 %v305
  %v338 = vunpack.c.l.b16 %v306
  %v339 = vunpack.c.l.b16 %v307
  %v340 = vunpack.c.l.b16 %v308
  %v341 = vunpack.c.l.b16 %v309
  %v342 = vunpack.c.l.b16 %v310
  %v343 = vunpack.c.l.b16 %v311
  %v344 = vunpack.c.l.b16 %v312
  %v345 = vunpack.c.l.b16 %v313
  %v346 = vunpack.c.l.b16 %v314
  %v347 = vunpack.c.l.b16 %v315
  %v348 = vunpack.c.l.b16 %v316
  %v349 = vpack.c.b16 %v334, %v333
  %v350 = vpack.c.b16 %v336, %v335
  %v351 = vpack.c.b16 %v338, %v337
  %v352 = vpack.c.b16 %v340, %v339
  %v353 = vpack.c.b16 %v342, %v341
  %v354 = vpack.c.b16 %v344, %v343
  %v355 = vpack.c.b16 %v346, %v345
  %v356 = vpack.c.b16 %v348, %v347
  %vm357 = vcmask 261120
  %v359 = vsel %vm357, %v300, 0
  %v362 = vsel %vm357, %v349, 0
  %v365 = vsel %vm357, %v350, 0
  %v368 = vsel %vm357, %v351, 0
  %v371 = vsel %vm357, %v352, 0
  %v374 = vsel %vm357, %v353, 0
  %v377 = vsel %vm357, %v354, 0
  %v380 = vsel %vm357, %v355, 0
  %v383 = vsel %vm357, %v356, 0
  %385 = vmatprep.subr.bf16.mxu0 0
  %386 = vmatpush1.bf16.xpose.msra.mxu0 %v383
  %387 = vmatprep.subr.bf16.mxu0 0
  %388 = vmatpush1.bf16.xpose.msra.mxu0 %v380
  %389 = vmatprep.subr.bf16.mxu0 0
  %390 = vmatpush1.bf16.xpose.msra.mxu0 %v377
  %391 = vmatprep.subr.bf16.mxu0 0
  %392 = vmatpush1.bf16.xpose.msra.mxu0 %v374
  %393 = vmatprep.subr.bf16.mxu0 0
  %394 = vmatpush1.bf16.xpose.msra.mxu0 %v371
  %395 = vmatprep.subr.bf16.mxu0 0
  %396 = vmatpush1.bf16.xpose.msra.mxu0 %v368
  %397 = vmatprep.subr.bf16.mxu0 0
  %398 = vmatpush1.bf16.xpose.msra.mxu0 %v365
  %399 = vmatprep.subr.bf16.mxu0 0
  %400 = vmatpush1.bf16.xpose.msra.mxu0 %v362
  %401 = vmatprep.subr.bf16.mxu0 0
  %402 = vmatpush2.bf16.xpose.msra.mxu0 0
  %403 = vmatprep.subr.bf16.mxu0 0
  %404 = vmatpush2.bf16.xpose.msra.mxu0 0
  %405 = vmatprep.subr.bf16.mxu0 0
  %406 = vmatpush2.bf16.xpose.msra.mxu0 0
  %407 = vmatprep.subr.bf16.mxu0 0
  %408 = vmatpush2.bf16.xpose.msra.mxu0 0
  %409 = vmatprep.subr.bf16.mxu0 0
  %410 = vmatpush2.bf16.xpose.msra.mxu0 0
  %411 = vmatprep.subr.bf16.mxu0 0
  %412 = vmatpush2.bf16.xpose.msra.mxu0 0
  %413 = vmatprep.subr.bf16.mxu0 0
  %414 = vmatpush2.bf16.xpose.msra.mxu0 0
  %415 = vmatprep.subr.bf16.mxu0 0
  %416 = vmatpush2.bf16.xpose.msra.mxu0 0
  %417 = vmatprep.mubr.bf16.mxu0 0
  %418 = vmatmul.mubr.bf16.gmra.mxu0 %v359
  %v419 = vpop.f32.mrf.mxu0
  %v420 = vadd.f32 0.0, %v419
  %v421 = vpop.f32.mrf.mxu0
  %v422 = vpop.f32.mrf.mxu0
  %v423 = vpop.f32.mrf.mxu0
  %424 = vdwg.mxu0
  %425 = vst [vmem:[%s3] sm:$0xff] %v420
  %s426 = scalar_lea.vmem %s0, 28
  %v427 = vld [vmem:[%s426] sm:$0xff]
  %v428 = vld [vmem:[%s426 + $0x8] sm:$0xff]
  %v429 = vld [vmem:[%s426 + $0x10] sm:$0xff]
  %v430 = vld [vmem:[%s426 + $0x18] sm:$0xf]
  %s431 = scalar_lea.vmem %s1, 112
  %v432 = vld [vmem:[%s431] sm:$0xff]
  %v433 = vld [vmem:[%s431 + $0x8] sm:$0xff]
  %v434 = vld [vmem:[%s431 + $0x10] sm:$0xff]
  %v435 = vld [vmem:[%s431 + $0x18] sm:$0xf]
  %v436 = vld [vmem:[%s431 + $0x1c] sm:$0xff]
  %v437 = vld [vmem:[%s431 + $0x24] sm:$0xff]
  %v438 = vld [vmem:[%s431 + $0x2c] sm:$0xff]
  %v439 = vld [vmem:[%s431 + $0x34] sm:$0xf]
  %v440 = vld [vmem:[%s431 + $0x38] sm:$0xff]
  %v441 = vld [vmem:[%s431 + $0x40] sm:$0xff]
  %v442 = vld [vmem:[%s431 + $0x48] sm:$0xff]
  %v443 = vld [vmem:[%s431 + $0x50] sm:$0xf]
  %v444 = vld [vmem:[%s431 + $0x54] sm:$0xff]
  %v445 = vld [vmem:[%s431 + $0x5c] sm:$0xff]
  %v446 = vld [vmem:[%s431 + $0x64] sm:$0xff]
  %v447 = vld [vmem:[%s431 + $0x6c] sm:$0xf]
  %v452 = vunpack.c.l.b16 %v427
  %v453 = vunpack.c.h.b16 %v427
  %v454 = vunpack.c.l.b16 %v428
  %v455 = vunpack.c.h.b16 %v428
  %v456 = vunpack.c.l.b16 %v429
  %v457 = vunpack.c.h.b16 %v429
  %v458 = vunpack.c.l.b16 %v430
  %v459 = vpack.c.b16 %v452, %v452
  %v460 = vpack.c.b16 %v453, %v453
  %v461 = vpack.c.b16 %v454, %v454
  %v462 = vpack.c.b16 %v455, %v455
  %v463 = vpack.c.b16 %v456, %v456
  %v464 = vpack.c.b16 %v457, %v457
  %v465 = vpack.c.b16 %v458, %v458
  %v488 = vunpack.c.l.b16 %v432
  %v489 = vunpack.c.h.b16 %v432
  %v490 = vunpack.c.l.b16 %v433
  %v491 = vunpack.c.h.b16 %v433
  %v492 = vunpack.c.l.b16 %v434
  %v493 = vunpack.c.h.b16 %v434
  %v494 = vunpack.c.l.b16 %v435
  %v495 = vunpack.c.l.b16 %v436
  %v496 = vunpack.c.h.b16 %v436
  %v497 = vunpack.c.l.b16 %v437
  %v498 = vunpack.c.h.b16 %v437
  %v499 = vunpack.c.l.b16 %v438
  %v500 = vunpack.c.h.b16 %v438
  %v501 = vunpack.c.l.b16 %v439
  %v502 = vunpack.c.l.b16 %v440
  %v503 = vunpack.c.h.b16 %v440
  %v504 = vunpack.c.l.b16 %v441
  %v505 = vunpack.c.h.b16 %v441
  %v506 = vunpack.c.l.b16 %v442
  %v507 = vunpack.c.h.b16 %v442
  %v508 = vunpack.c.l.b16 %v443
  %v509 = vunpack.c.l.b16 %v444
  %v510 = vunpack.c.h.b16 %v444
  %v511 = vunpack.c.l.b16 %v445
  %v512 = vunpack.c.h.b16 %v445
  %v513 = vunpack.c.l.b16 %v446
  %v514 = vunpack.c.h.b16 %v446
  %v515 = vunpack.c.l.b16 %v447
  %v516 = vpack.c.b16 %v495, %v488
  %v517 = vpack.c.b16 %v496, %v489
  %v518 = vpack.c.b16 %v497, %v490
  %v519 = vpack.c.b16 %v498, %v491
  %v520 = vpack.c.b16 %v499, %v492
  %v521 = vpack.c.b16 %v500, %v493
  %v522 = vpack.c.b16 %v501, %v494
  %v523 = vpack.c.b16 %v509, %v502
  %v524 = vpack.c.b16 %v510, %v503
  %v525 = vpack.c.b16 %v511, %v504
  %v526 = vpack.c.b16 %v512, %v505
  %v527 = vpack.c.b16 %v513, %v506
  %v528 = vpack.c.b16 %v514, %v507
  %v529 = vpack.c.b16 %v515, %v508
  %v543 = vsel %vm129, %v465, 0
  %v546 = vsel %vm129, %v522, 0
  %v549 = vsel %vm129, %v529, 0
  %551 = vmatprep.subr.bf16.mxu0 0
  %552 = vmatpush1.bf16.xpose.msra.mxu0 0
  %553 = vmatprep.subr.bf16.mxu0 0
  %554 = vmatpush1.bf16.xpose.msra.mxu0 0
  %555 = vmatprep.subr.bf16.mxu0 0
  %556 = vmatpush1.bf16.xpose.msra.mxu0 0
  %557 = vmatprep.subr.bf16.mxu0 0
  %558 = vmatpush1.bf16.xpose.msra.mxu0 0
  %559 = vmatprep.subr.bf16.mxu0 0
  %560 = vmatpush1.bf16.xpose.msra.mxu0 0
  %561 = vmatprep.subr.bf16.mxu0 0
  %562 = vmatpush1.bf16.xpose.msra.mxu0 0
  %563 = vmatprep.subr.bf16.mxu0 %v524
  %564 = vmatpush1.bf16.xpose.msra.mxu0 %v523
  %565 = vmatprep.subr.bf16.mxu0 %v517
  %566 = vmatpush1.bf16.xpose.msra.mxu0 %v516
  %567 = vmatprep.subr.bf16.mxu0 0
  %568 = vmatpush2.bf16.xpose.msra.mxu0 0
  %569 = vmatprep.subr.bf16.mxu0 0
  %570 = vmatpush2.bf16.xpose.msra.mxu0 0
  %571 = vmatprep.subr.bf16.mxu0 0
  %572 = vmatpush2.bf16.xpose.msra.mxu0 0
  %573 = vmatprep.subr.bf16.mxu0 0
  %574 = vmatpush2.bf16.xpose.msra.mxu0 0
  %575 = vmatprep.subr.bf16.mxu0 0
  %576 = vmatpush2.bf16.xpose.msra.mxu0 0
  %577 = vmatprep.subr.bf16.mxu0 0
  %578 = vmatpush2.bf16.xpose.msra.mxu0 0
  %579 = vmatprep.subr.bf16.mxu0 0
  %580 = vmatpush2.bf16.xpose.msra.mxu0 0
  %581 = vmatprep.subr.bf16.mxu0 0
  %582 = vmatpush2.bf16.xpose.msra.mxu0 0
  %583 = vmatprep.mubr.bf16.mxu0 %v460
  %584 = vmatmul.mubr.bf16.gmra.mxu0 %v459
  %v585 = vpop.f32.mrf.mxu0
  %v586 = vadd.f32 0.0, %v585
  %v587 = vpop.f32.mrf.mxu0
  %v588 = vpop.f32.mrf.mxu0
  %v589 = vpop.f32.mrf.mxu0
  %590 = vdwg.mxu0
  %591 = vmatprep.subr.bf16.mxu0 0
  %592 = vmatpush1.bf16.xpose.msra.mxu0 0
  %593 = vmatprep.subr.bf16.mxu0 0
  %594 = vmatpush1.bf16.xpose.msra.mxu0 0
  %595 = vmatprep.subr.bf16.mxu0 0
  %596 = vmatpush1.bf16.xpose.msra.mxu0 0
  %597 = vmatprep.subr.bf16.mxu0 0
  %598 = vmatpush1.bf16.xpose.msra.mxu0 0
  %599 = vmatprep.subr.bf16.mxu0 0
  %600 = vmatpush1.bf16.xpose.msra.mxu0 0
  %601 = vmatprep.subr.bf16.mxu0 0
  %602 = vmatpush1.bf16.xpose.msra.mxu0 0
  %603 = vmatprep.subr.bf16.mxu0 %v526
  %604 = vmatpush1.bf16.xpose.msra.mxu0 %v525
  %605 = vmatprep.subr.bf16.mxu0 %v519
  %606 = vmatpush1.bf16.xpose.msra.mxu0 %v518
  %607 = vmatprep.subr.bf16.mxu0 0
  %608 = vmatpush2.bf16.xpose.msra.mxu0 0
  %609 = vmatprep.subr.bf16.mxu0 0
  %610 = vmatpush2.bf16.xpose.msra.mxu0 0
  %611 = vmatprep.subr.bf16.mxu0 0
  %612 = vmatpush2.bf16.xpose.msra.mxu0 0
  %613 = vmatprep.subr.bf16.mxu0 0
  %614 = vmatpush2.bf16.xpose.msra.mxu0 0
  %615 = vmatprep.subr.bf16.mxu0 0
  %616 = vmatpush2.bf16.xpose.msra.mxu0 0
  %617 = vmatprep.subr.bf16.mxu0 0
  %618 = vmatpush2.bf16.xpose.msra.mxu0 0
  %619 = vmatprep.subr.bf16.mxu0 0
  %620 = vmatpush2.bf16.xpose.msra.mxu0 0
  %621 = vmatprep.subr.bf16.mxu0 0
  %622 = vmatpush2.bf16.xpose.msra.mxu0 0
  %623 = vmatprep.mubr.bf16.mxu0 %v462
  %624 = vmatmul.mubr.bf16.gmra.mxu0 %v461
  %v625 = vpop.f32.mrf.mxu0
  %v626 = vadd.f32 %v586, %v625
  %v627 = vpop.f32.mrf.mxu0
  %v628 = vpop.f32.mrf.mxu0
  %v629 = vpop.f32.mrf.mxu0
  %630 = vdwg.mxu0
  %631 = vmatprep.subr.bf16.mxu0 0
  %632 = vmatpush1.bf16.xpose.msra.mxu0 0
  %633 = vmatprep.subr.bf16.mxu0 0
  %634 = vmatpush1.bf16.xpose.msra.mxu0 0
  %635 = vmatprep.subr.bf16.mxu0 0
  %636 = vmatpush1.bf16.xpose.msra.mxu0 0
  %637 = vmatprep.subr.bf16.mxu0 0
  %638 = vmatpush1.bf16.xpose.msra.mxu0 0
  %639 = vmatprep.subr.bf16.mxu0 0
  %640 = vmatpush1.bf16.xpose.msra.mxu0 0
  %641 = vmatprep.subr.bf16.mxu0 0
  %642 = vmatpush1.bf16.xpose.msra.mxu0 0
  %643 = vmatprep.subr.bf16.mxu0 %v528
  %644 = vmatpush1.bf16.xpose.msra.mxu0 %v527
  %645 = vmatprep.subr.bf16.mxu0 %v521
  %646 = vmatpush1.bf16.xpose.msra.mxu0 %v520
  %647 = vmatprep.subr.bf16.mxu0 0
  %648 = vmatpush2.bf16.xpose.msra.mxu0 0
  %649 = vmatprep.subr.bf16.mxu0 0
  %650 = vmatpush2.bf16.xpose.msra.mxu0 0
  %651 = vmatprep.subr.bf16.mxu0 0
  %652 = vmatpush2.bf16.xpose.msra.mxu0 0
  %653 = vmatprep.subr.bf16.mxu0 0
  %654 = vmatpush2.bf16.xpose.msra.mxu0 0
  %655 = vmatprep.subr.bf16.mxu0 0
  %656 = vmatpush2.bf16.xpose.msra.mxu0 0
  %657 = vmatprep.subr.bf16.mxu0 0
  %658 = vmatpush2.bf16.xpose.msra.mxu0 0
  %659 = vmatprep.subr.bf16.mxu0 0
  %660 = vmatpush2.bf16.xpose.msra.mxu0 0
  %661 = vmatprep.subr.bf16.mxu0 0
  %662 = vmatpush2.bf16.xpose.msra.mxu0 0
  %663 = vmatprep.mubr.bf16.mxu0 %v464
  %664 = vmatmul.mubr.bf16.gmra.mxu0 %v463
  %v665 = vpop.f32.mrf.mxu0
  %v666 = vadd.f32 %v626, %v665
  %v667 = vpop.f32.mrf.mxu0
  %v668 = vpop.f32.mrf.mxu0
  %v669 = vpop.f32.mrf.mxu0
  %670 = vdwg.mxu0
  %671 = vmatprep.subr.bf16.mxu0 0
  %672 = vmatpush1.bf16.xpose.msra.mxu0 0
  %673 = vmatprep.subr.bf16.mxu0 0
  %674 = vmatpush1.bf16.xpose.msra.mxu0 0
  %675 = vmatprep.subr.bf16.mxu0 0
  %676 = vmatpush1.bf16.xpose.msra.mxu0 0
  %677 = vmatprep.subr.bf16.mxu0 0
  %678 = vmatpush1.bf16.xpose.msra.mxu0 0
  %679 = vmatprep.subr.bf16.mxu0 0
  %680 = vmatpush1.bf16.xpose.msra.mxu0 0
  %681 = vmatprep.subr.bf16.mxu0 0
  %682 = vmatpush1.bf16.xpose.msra.mxu0 0
  %683 = vmatprep.subr.bf16.mxu0 0
  %684 = vmatpush1.bf16.xpose.msra.mxu0 %v549
  %685 = vmatprep.subr.bf16.mxu0 0
  %686 = vmatpush1.bf16.xpose.msra.mxu0 %v546
  %687 = vmatprep.subr.bf16.mxu0 0
  %688 = vmatpush2.bf16.xpose.msra.mxu0 0
  %689 = vmatprep.subr.bf16.mxu0 0
  %690 = vmatpush2.bf16.xpose.msra.mxu0 0
  %691 = vmatprep.subr.bf16.mxu0 0
  %692 = vmatpush2.bf16.xpose.msra.mxu0 0
  %693 = vmatprep.subr.bf16.mxu0 0
  %694 = vmatpush2.bf16.xpose.msra.mxu0 0
  %695 = vmatprep.subr.bf16.mxu0 0
  %696 = vmatpush2.bf16.xpose.msra.mxu0 0
  %697 = vmatprep.subr.bf16.mxu0 0
  %698 = vmatpush2.bf16.xpose.msra.mxu0 0
  %699 = vmatprep.subr.bf16.mxu0 0
  %700 = vmatpush2.bf16.xpose.msra.mxu0 0
  %701 = vmatprep.subr.bf16.mxu0 0
  %702 = vmatpush2.bf16.xpose.msra.mxu0 0
  %703 = vmatprep.mubr.bf16.mxu0 0
  %704 = vmatmul.mubr.bf16.gmra.mxu0 %v543
  %v705 = vpop.f32.mrf.mxu0
  %v706 = vadd.f32 %v666, %v705
  %v707 = vpop.f32.mrf.mxu0
  %v708 = vpop.f32.mrf.mxu0
  %v709 = vpop.f32.mrf.mxu0
  %710 = vdwg.mxu0
  %v711 = vmax.f32 %v706, 0.0
  %v712 = vpack.c.bf16 %v711, %v711
  %s713 = scalar_lea.vmem %s2, 64
  %v714 = vld [vmem:[%s713] sm:$0xf]
  %v715 = vld [vmem:[%s713 + $0x4] sm:$0xf]
  %v716 = vld [vmem:[%s713 + $0x8] sm:$0xf]
  %v717 = vld [vmem:[%s713 + $0xc] sm:$0xf]
  %v718 = vld [vmem:[%s713 + $0x10] sm:$0xf]
  %v719 = vld [vmem:[%s713 + $0x14] sm:$0xf]
  %v720 = vld [vmem:[%s713 + $0x18] sm:$0xf]
  %v721 = vld [vmem:[%s713 + $0x1c] sm:$0xf]
  %v722 = vld [vmem:[%s713 + $0x20] sm:$0xf]
  %v723 = vld [vmem:[%s713 + $0x24] sm:$0xf]
  %v724 = vld [vmem:[%s713 + $0x28] sm:$0xf]
  %v725 = vld [vmem:[%s713 + $0x2c] sm:$0xf]
  %v726 = vld [vmem:[%s713 + $0x30] sm:$0xf]
  %v727 = vld [vmem:[%s713 + $0x34] sm:$0xf]
  %v728 = vld [vmem:[%s713 + $0x38] sm:$0xf]
  %v729 = vld [vmem:[%s713 + $0x3c] sm:$0xf]
  %v746 = vunpack.c.l.b16 %v714
  %v747 = vunpack.c.l.b16 %v715
  %v748 = vunpack.c.l.b16 %v716
  %v749 = vunpack.c.l.b16 %v717
  %v750 = vunpack.c.l.b16 %v718
  %v751 = vunpack.c.l.b16 %v719
  %v752 = vunpack.c.l.b16 %v720
  %v753 = vunpack.c.l.b16 %v721
  %v754 = vunpack.c.l.b16 %v722
  %v755 = vunpack.c.l.b16 %v723
  %v756 = vunpack.c.l.b16 %v724
  %v757 = vunpack.c.l.b16 %v725
  %v758 = vunpack.c.l.b16 %v726
  %v759 = vunpack.c.l.b16 %v727
  %v760 = vunpack.c.l.b16 %v728
  %v761 = vunpack.c.l.b16 %v729
  %v762 = vpack.c.b16 %v747, %v746
  %v763 = vpack.c.b16 %v749, %v748
  %v764 = vpack.c.b16 %v751, %v750
  %v765 = vpack.c.b16 %v753, %v752
  %v766 = vpack.c.b16 %v755, %v754
  %v767 = vpack.c.b16 %v757, %v756
  %v768 = vpack.c.b16 %v759, %v758
  %v769 = vpack.c.b16 %v761, %v760
  %v771 = vsel %vm357, %v712, 0
  %v774 = vsel %vm357, %v762, 0
  %v777 = vsel %vm357, %v763, 0
  %v780 = vsel %vm357, %v764, 0
  %v783 = vsel %vm357, %v765, 0
  %v786 = vsel %vm357, %v766, 0
  %v789 = vsel %vm357, %v767, 0
  %v792 = vsel %vm357, %v768, 0
  %v795 = vsel %vm357, %v769, 0
  %797 = vmatprep.subr.bf16.mxu0 0
  %798 = vmatpush1.bf16.xpose.msra.mxu0 %v795
  %799 = vmatprep.subr.bf16.mxu0 0
  %800 = vmatpush1.bf16.xpose.msra.mxu0 %v792
  %801 = vmatprep.subr.bf16.mxu0 0
  %802 = vmatpush1.bf16.xpose.msra.mxu0 %v789
  %803 = vmatprep.subr.bf16.mxu0 0
  %804 = vmatpush1.bf16.xpose.msra.mxu0 %v786
  %805 = vmatprep.subr.bf16.mxu0 0
  %806 = vmatpush1.bf16.xpose.msra.mxu0 %v783
  %807 = vmatprep.subr.bf16.mxu0 0
  %808 = vmatpush1.bf16.xpose.msra.mxu0 %v780
  %809 = vmatprep.subr.bf16.mxu0 0
  %810 = vmatpush1.bf16.xpose.msra.mxu0 %v777
  %811 = vmatprep.subr.bf16.mxu0 0
  %812 = vmatpush1.bf16.xpose.msra.mxu0 %v774
  %813 = vmatprep.subr.bf16.mxu0 0
  %814 = vmatpush2.bf16.xpose.msra.mxu0 0
  %815 = vmatprep.subr.bf16.mxu0 0
  %816 = vmatpush2.bf16.xpose.msra.mxu0 0
  %817 = vmatprep.subr.bf16.mxu0 0
  %818 = vmatpush2.bf16.xpose.msra.mxu0 0
  %819 = vmatprep.subr.bf16.mxu0 0
  %820 = vmatpush2.bf16.xpose.msra.mxu0 0
  %821 = vmatprep.subr.bf16.mxu0 0
  %822 = vmatpush2.bf16.xpose.msra.mxu0 0
  %823 = vmatprep.subr.bf16.mxu0 0
  %824 = vmatpush2.bf16.xpose.msra.mxu0 0
  %825 = vmatprep.subr.bf16.mxu0 0
  %826 = vmatpush2.bf16.xpose.msra.mxu0 0
  %827 = vmatprep.subr.bf16.mxu0 0
  %828 = vmatpush2.bf16.xpose.msra.mxu0 0
  %829 = vmatprep.mubr.bf16.mxu0 0
  %830 = vmatmul.mubr.bf16.gmra.mxu0 %v771
  %v831 = vpop.f32.mrf.mxu0
  %v832 = vadd.f32 0.0, %v831
  %v833 = vpop.f32.mrf.mxu0
  %v834 = vpop.f32.mrf.mxu0
  %v835 = vpop.f32.mrf.mxu0
  %836 = vdwg.mxu0
  %s837 = scalar_lea.vmem %s3, 8
  %838 = vst [vmem:[%s837] sm:$0xff] %v832
  %s839 = scalar_lea.vmem %s0, 56
  %v840 = vld [vmem:[%s839] sm:$0xff]
  %v841 = vld [vmem:[%s839 + $0x8] sm:$0xff]
  %v842 = vld [vmem:[%s839 + $0x10] sm:$0xff]
  %v843 = vld [vmem:[%s839 + $0x18] sm:$0xf]
  %s844 = scalar_lea.vmem %s1, 224
  %v845 = vld [vmem:[%s844] sm:$0xff]
  %v846 = vld [vmem:[%s844 + $0x8] sm:$0xff]
  %v847 = vld [vmem:[%s844 + $0x10] sm:$0xff]
  %v848 = vld [vmem:[%s844 + $0x18] sm:$0xf]
  %v849 = vld [vmem:[%s844 + $0x1c] sm:$0xff]
  %v850 = vld [vmem:[%s844 + $0x24] sm:$0xff]
  %v851 = vld [vmem:[%s844 + $0x2c] sm:$0xff]
  %v852 = vld [vmem:[%s844 + $0x34] sm:$0xf]
  %v853 = vld [vmem:[%s844 + $0x38] sm:$0xff]
  %v854 = vld [vmem:[%s844 + $0x40] sm:$0xff]
  %v855 = vld [vmem:[%s844 + $0x48] sm:$0xff]
  %v856 = vld [vmem:[%s844 + $0x50] sm:$0xf]
  %v857 = vld [vmem:[%s844 + $0x54] sm:$0xff]
  %v858 = vld [vmem:[%s844 + $0x5c] sm:$0xff]
  %v859 = vld [vmem:[%s844 + $0x64] sm:$0xff]
  %v860 = vld [vmem:[%s844 + $0x6c] sm:$0xf]
  %v865 = vunpack.c.l.b16 %v840
  %v866 = vunpack.c.h.b16 %v840
  %v867 = vunpack.c.l.b16 %v841
  %v868 = vunpack.c.h.b16 %v841
  %v869 = vunpack.c.l.b16 %v842
  %v870 = vunpack.c.h.b16 %v842
  %v871 = vunpack.c.l.b16 %v843
  %v872 = vpack.c.b16 %v865, %v865
  %v873 = vpack.c.b16 %v866, %v866
  %v874 = vpack.c.b16 %v867, %v867
  %v875 = vpack.c.b16 %v868, %v868
  %v876 = vpack.c.b16 %v869, %v869
  %v877 = vpack.c.b16 %v870, %v870
  %v878 = vpack.c.b16 %v871, %v871
  %v901 = vunpack.c.l.b16 %v845
  %v902 = vunpack.c.h.b16 %v845
  %v903 = vunpack.c.l.b16 %v846
  %v904 = vunpack.c.h.b16 %v846
  %v905 = vunpack.c.l.b16 %v847
  %v906 = vunpack.c.h.b16 %v847
  %v907 = vunpack.c.l.b16 %v848
  %v908 = vunpack.c.l.b16 %v849
  %v909 = vunpack.c.h.b16 %v849
  %v910 = vunpack.c.l.b16 %v850
  %v911 = vunpack.c.h.b16 %v850
  %v912 = vunpack.c.l.b16 %v851
  %v913 = vunpack.c.h.b16 %v851
  %v914 = vunpack.c.l.b16 %v852
  %v915 = vunpack.c.l.b16 %v853
  %v916 = vunpack.c.h.b16 %v853
  %v917 = vunpack.c.l.b16 %v854
  %v918 = vunpack.c.h.b16 %v854
  %v919 = vunpack.c.l.b16 %v855
  %v920 = vunpack.c.h.b16 %v855
  %v921 = vunpack.c.l.b16 %v856
  %v922 = vunpack.c.l.b16 %v857
  %v923 = vunpack.c.h.b16 %v857
  %v924 = vunpack.c.l.b16 %v858
  %v925 = vunpack.c.h.b16 %v858
  %v926 = vunpack.c.l.b16 %v859
  %v927 = vunpack.c.h.b16 %v859
  %v928 = vunpack.c.l.b16 %v860
  %v929 = vpack.c.b16 %v908, %v901
  %v930 = vpack.c.b16 %v909, %v902
  %v931 = vpack.c.b16 %v910, %v903
  %v932 = vpack.c.b16 %v911, %v904
  %v933 = vpack.c.b16 %v912, %v905
  %v934 = vpack.c.b16 %v913, %v906
  %v935 = vpack.c.b16 %v914, %v907
  %v936 = vpack.c.b16 %v922, %v915
  %v937 = vpack.c.b16 %v923, %v916
  %v938 = vpack.c.b16 %v924, %v917
  %v939 = vpack.c.b16 %v925, %v918
  %v940 = vpack.c.b16 %v926, %v919
  %v941 = vpack.c.b16 %v927, %v920
  %v942 = vpack.c.b16 %v928, %v921
  %v956 = vsel %vm129, %v878, 0
  %v959 = vsel %vm129, %v935, 0
  %v962 = vsel %vm129, %v942, 0
  %964 = vmatprep.subr.bf16.mxu0 0
  %965 = vmatpush1.bf16.xpose.msra.mxu0 0
  %966 = vmatprep.subr.bf16.mxu0 0
  %967 = vmatpush1.bf16.xpose.msra.mxu0 0
  %968 = vmatprep.subr.bf16.mxu0 0
  %969 = vmatpush1.bf16.xpose.msra.mxu0 0
  %970 = vmatprep.subr.bf16.mxu0 0
  %971 = vmatpush1.bf16.xpose.msra.mxu0 0
  %972 = vmatprep.subr.bf16.mxu0 0
  %973 = vmatpush1.bf16.xpose.msra.mxu0 0
  %974 = vmatprep.subr.bf16.mxu0 0
  %975 = vmatpush1.bf16.xpose.msra.mxu0 0
  %976 = vmatprep.subr.bf16.mxu0 %v937
  %977 = vmatpush1.bf16.xpose.msra.mxu0 %v936
  %978 = vmatprep.subr.bf16.mxu0 %v930
  %979 = vmatpush1.bf16.xpose.msra.mxu0 %v929
  %980 = vmatprep.subr.bf16.mxu0 0
  %981 = vmatpush2.bf16.xpose.msra.mxu0 0
  %982 = vmatprep.subr.bf16.mxu0 0
  %983 = vmatpush2.bf16.xpose.msra.mxu0 0
  %984 = vmatprep.subr.bf16.mxu0 0
  %985 = vmatpush2.bf16.xpose.msra.mxu0 0
  %986 = vmatprep.subr.bf16.mxu0 0
  %987 = vmatpush2.bf16.xpose.msra.mxu0 0
  %988 = vmatprep.subr.bf16.mxu0 0
  %989 = vmatpush2.bf16.xpose.msra.mxu0 0
  %990 = vmatprep.subr.bf16.mxu0 0
  %991 = vmatpush2.bf16.xpose.msra.mxu0 0
  %992 = vmatprep.subr.bf16.mxu0 0
  %993 = vmatpush2.bf16.xpose.msra.mxu0 0
  %994 = vmatprep.subr.bf16.mxu0 0
  %995 = vmatpush2.bf16.xpose.msra.mxu0 0
  %996 = vmatprep.mubr.bf16.mxu0 %v873
  %997 = vmatmul.mubr.bf16.gmra.mxu0 %v872
  %v998 = vpop.f32.mrf.mxu0
  %v999 = vadd.f32 0.0, %v998
  %v1000 = vpop.f32.mrf.mxu0
  %v1001 = vpop.f32.mrf.mxu0
  %v1002 = vpop.f32.mrf.mxu0
  %1003 = vdwg.mxu0
  %1004 = vmatprep.subr.bf16.mxu0 0
  %1005 = vmatpush1.bf16.xpose.msra.mxu0 0
  %1006 = vmatprep.subr.bf16.mxu0 0
  %1007 = vmatpush1.bf16.xpose.msra.mxu0 0
  %1008 = vmatprep.subr.bf16.mxu0 0
  %1009 = vmatpush1.bf16.xpose.msra.mxu0 0
  %1010 = vmatprep.subr.bf16.mxu0 0
  %1011 = vmatpush1.bf16.xpose.msra.mxu0 0
  %1012 = vmatprep.subr.bf16.mxu0 0
  %1013 = vmatpush1.bf16.xpose.msra.mxu0 0
  %1014 = vmatprep.subr.bf16.mxu0 0
  %1015 = vmatpush1.bf16.xpose.msra.mxu0 0
  %1016 = vmatprep.subr.bf16.mxu0 %v939
  %1017 = vmatpush1.bf16.xpose.msra.mxu0 %v938
  %1018 = vmatprep.subr.bf16.mxu0 %v932
  %1019 = vmatpush1.bf16.xpose.msra.mxu0 %v931
  %1020 = vmatprep.subr.bf16.mxu0 0
  %1021 = vmatpush2.bf16.xpose.msra.mxu0 0
  %1022 = vmatprep.subr.bf16.mxu0 0
  %1023 = vmatpush2.bf16.xpose.msra.mxu0 0
  %1024 = vmatprep.subr.bf16.mxu0 0
  %1025 = vmatpush2.bf16.xpose.msra.mxu0 0
  %1026 = vmatprep.subr.bf16.mxu0 0
  %1027 = vmatpush2.bf16.xpose.msra.mxu0 0
  %1028 = vmatprep.subr.bf16.mxu0 0
  %1029 = vmatpush2.bf16.xpose.msra.mxu0 0
  %1030 = vmatprep.subr.bf16.mxu0 0
  %1031 = vmatpush2.bf16.xpose.msra.mxu0 0
  %1032 = vmatprep.subr.bf16.mxu0 0
  %1033 = vmatpush2.bf16.xpose.msra.mxu0 0
  %1034 = vmatprep.subr.bf16.mxu0 0
  %1035 = vmatpush2.bf16.xpose.msra.mxu0 0
  %1036 = vmatprep.mubr.bf16.mxu0 %v875
  %1037 = vmatmul.mubr.bf16.gmra.mxu0 %v874
  %v1038 = vpop.f32.mrf.mxu0
  %v1039 = vadd.f32 %v999, %v1038
  %v1040 = vpop.f32.mrf.mxu0
  %v1041 = vpop.f32.mrf.mxu0
  %v1042 = vpop.f32.mrf.mxu0
  %1043 = vdwg.mxu0
  %1044 = vmatprep.subr.bf16.mxu0 0
  %1045 = vmatpush1.bf16.xpose.msra.mxu0 0
  %1046 = vmatprep.subr.bf16.mxu0 0
  %1047 = vmatpush1.bf16.xpose.msra.mxu0 0
  %1048 = vmatprep.subr.bf16.mxu0 0
  %1049 = vmatpush1.bf16.xpose.msra.mxu0 0
  %1050 = vmatprep.subr.bf16.mxu0 0
  %1051 = vmatpush1.bf16.xpose.msra.mxu0 0
  %1052 = vmatprep.subr.bf16.mxu0 0
  %1053 = vmatpush1.bf16.xpose.msra.mxu0 0
  %1054 = vmatprep.subr.bf16.mxu0 0
  %1055 = vmatpush1.bf16.xpose.msra.mxu0 0
  %1056 = vmatprep.subr.bf16.mxu0 %v941
  %1057 = vmatpush1.bf16.xpose.msra.mxu0 %v940
  %1058 = vmatprep.subr.bf16.mxu0 %v934
  %1059 = vmatpush1.bf16.xpose.msra.mxu0 %v933
  %1060 = vmatprep.subr.bf16.mxu0 0
  %1061 = vmatpush2.bf16.xpose.msra.mxu0 0
  %1062 = vmatprep.subr.bf16.mxu0 0
  %1063 = vmatpush2.bf16.xpose.msra.mxu0 0
  %1064 = vmatprep.subr.bf16.mxu0 0
  %1065 = vmatpush2.bf16.xpose.msra.mxu0 0
  %1066 = vmatprep.subr.bf16.mxu0 0
  %1067 = vmatpush2.bf16.xpose.msra.mxu0 0
  %1068 = vmatprep.subr.bf16.mxu0 0
  %1069 = vmatpush2.bf16.xpose.msra.mxu0 0
  %1070 = vmatprep.subr.bf16.mxu0 0
  %1071 = vmatpush2.bf16.xpose.msra.mxu0 0
  %1072 = vmatprep.subr.bf16.mxu0 0
  %1073 = vmatpush2.bf16.xpose.msra.mxu0 0
  %1074 = vmatprep.subr.bf16.mxu0 0
  %1075 = vmatpush2.bf16.xpose.msra.mxu0 0
  %1076 = vmatprep.mubr.bf16.mxu0 %v877
  %1077 = vmatmul.mubr.bf16.gmra.mxu0 %v876
  %v1078 = vpop.f32.mrf.mxu0
  %v1079 = vadd.f32 %v1039, %v1078
  %v1080 = vpop.f32.mrf.mxu0
  %v1081 = vpop.f32.mrf.mxu0
  %v1082 = vpop.f32.mrf.mxu0
  %1083 = vdwg.mxu0
  %1084 = vmatprep.subr.bf16.mxu0 0
  %1085 = vmatpush1.bf16.xpose.msra.mxu0 0
  %1086 = vmatprep.subr.bf16.mxu0 0
  %1087 = vmatpush1.bf16.xpose.msra.mxu0 0
  %1088 = vmatprep.subr.bf16.mxu0 0
  %1089 = vmatpush1.bf16.xpose.msra.mxu0 0
  %1090 = vmatprep.subr.bf16.mxu0 0
  %1091 = vmatpush1.bf16.xpose.msra.mxu0 0
  %1092 = vmatprep.subr.bf16.mxu0 0
  %1093 = vmatpush1.bf16.xpose.msra.mxu0 0
  %1094 = vmatprep.subr.bf16.mxu0 0
  %1095 = vmatpush1.bf16.xpose.msra.mxu0 0
  %1096 = vmatprep.subr.bf16.mxu0 0
  %1097 = vmatpush1.bf16.xpose.msra.mxu0 %v962
  %1098 = vmatprep.subr.bf16.mxu0 0
  %1099 = vmatpush1.bf16.xpose.msra.mxu0 %v959
  %1100 = vmatprep.subr.bf16.mxu0 0
  %1101 = vmatpush2.bf16.xpose.msra.mxu0 0
  %1102 = vmatprep.subr.bf16.mxu0 0
  %1103 = vmatpush2.bf16.xpose.msra.mxu0 0
  %1104 = vmatprep.subr.bf16.mxu0 0
  %1105 = vmatpush2.bf16.xpose.msra.mxu0 0
  %1106 = vmatprep.subr.bf16.mxu0 0
  %1107 = vmatpush2.bf16.xpose.msra.mxu0 0
  %1108 = vmatprep.subr.bf16.mxu0 0
  %1109 = vmatpush2.bf16.xpose.msra.mxu0 0
  %1110 = vmatprep.subr.bf16.mxu0 0
  %1111 = vmatpush2.bf16.xpose.msra.mxu0 0
  %1112 = vmatprep.subr.bf16.mxu0 0
  %1113 = vmatpush2.bf16.xpose.msra.mxu0 0
  %1114 = vmatprep.subr.bf16.mxu0 0
  %1115 = vmatpush2.bf16.xpose.msra.mxu0 0
  %1116 = vmatprep.mubr.bf16.mxu0 0
  %1117 = vmatmul.mubr.bf16.gmra.mxu0 %v956
  %v1118 = vpop.f32.mrf.mxu0
  %v1119 = vadd.f32 %v1079, %v1118
  %v1120 = vpop.f32.mrf.mxu0
  %v1121 = vpop.f32.mrf.mxu0
  %v1122 = vpop.f32.mrf.mxu0
  %1123 = vdwg.mxu0
  %v1124 = vmax.f32 %v1119, 0.0
  %v1125 = vpack.c.bf16 %v1124, %v1124
  %s1126 = scalar_lea.vmem %s2, 128
  %v1127 = vld [vmem:[%s1126] sm:$0xf]
  %v1128 = vld [vmem:[%s1126 + $0x4] sm:$0xf]
  %v1129 = vld [vmem:[%s1126 + $0x8] sm:$0xf]
  %v1130 = vld [vmem:[%s1126 + $0xc] sm:$0xf]
  %v1131 = vld [vmem:[%s1126 + $0x10] sm:$0xf]
  %v1132 = vld [vmem:[%s1126 + $0x14] sm:$0xf]
  %v1133 = vld [vmem:[%s1126 + $0x18] sm:$0xf]
  %v1134 = vld [vmem:[%s1126 + $0x1c] sm:$0xf]
  %v1135 = vld [vmem:[%s1126 + $0x20] sm:$0xf]
  %v1136 = vld [vmem:[%s1126 + $0x24] sm:$0xf]
  %v1137 = vld [vmem:[%s1126 + $0x28] sm:$0xf]
  %v1138 = vld [vmem:[%s1126 + $0x2c] sm:$0xf]
  %v1139 = vld [vmem:[%s1126 + $0x30] sm:$0xf]
  %v1140 = vld [vmem:[%s1126 + $0x34] sm:$0xf]
  %v1141 = vld [vmem:[%s1126 + $0x38] sm:$0xf]
  %v1142 = vld [vmem:[%s1126 + $0x3c] sm:$0xf]
  %v1159 = vunpack.c.l.b16 %v1127
  %v1160 = vunpack.c.l.b16 %v1128
  %v1161 = vunpack.c.l.b16 %v1129
  %v1162 = vunpack.c.l.b16 %v1130
  %v1163 = vunpack.c.l.b16 %v1131
  %v1164 = vunpack.c.l.b16 %v1132
  %v1165 = vunpack.c.l.b16 %v1133
  %v1166 = vunpack.c.l.b16 %v1134
  %v1167 = vunpack.c.l.b16 %v1135
  %v1168 = vunpack.c.l.b16 %v1136
  %v1169 = vunpack.c.l.b16 %v1137
  %v1170 = vunpack.c.l.b16 %v1138
  %v1171 = vunpack.c.l.b16 %v1139
  %v1172 = vunpack.c.l.b16 %v1140
  %v1173 = vunpack.c.l.b16 %v1141
  %v1174 = vunpack.c.l.b16 %v1142
  %v1175 = vpack.c.b16 %v1160, %v1159
  %v1176 = vpack.c.b16 %v1162, %v1161
  %v1177 = vpack.c.b16 %v1164, %v1163
  %v1178 = vpack.c.b16 %v1166, %v1165
  %v1179 = vpack.c.b16 %v1168, %v1167
  %v1180 = vpack.c.b16 %v1170, %v1169
  %v1181 = vpack.c.b16 %v1172, %v1171
  %v1182 = vpack.c.b16 %v1174, %v1173
  %v1184 = vsel %vm357, %v1125, 0
  %v1187 = vsel %vm357, %v1175, 0
  %v1190 = vsel %vm357, %v1176, 0
  %v1193 = vsel %vm357, %v1177, 0
  %v1196 = vsel %vm357, %v1178, 0
  %v1199 = vsel %vm357, %v1179, 0
  %v1202 = vsel %vm357, %v1180, 0
  %v1205 = vsel %vm357, %v1181, 0
  %v1208 = vsel %vm357, %v1182, 0
  %1210 = vmatprep.subr.bf16.mxu0 0
  %1211 = vmatpush1.bf16.xpose.msra.mxu0 %v1208
  %1212 = vmatprep.subr.bf16.mxu0 0
  %1213 = vmatpush1.bf16.xpose.msra.mxu0 %v1205
  %1214 = vmatprep.subr.bf16.mxu0 0
  %1215 = vmatpush1.bf16.xpose.msra.mxu0 %v1202
  %1216 = vmatprep.subr.bf16.mxu0 0
  %1217 = vmatpush1.bf16.xpose.msra.mxu0 %v1199
  %1218 = vmatprep.subr.bf16.mxu0 0
  %1219 = vmatpush1.bf16.xpose.msra.mxu0 %v1196
  %1220 = vmatprep.subr.bf16.mxu0 0
  %1221 = vmatpush1.bf16.xpose.msra.mxu0 %v1193
  %1222 = vmatprep.subr.bf16.mxu0 0
  %1223 = vmatpush1.bf16.xpose.msra.mxu0 %v1190
  %1224 = vmatprep.subr.bf16.mxu0 0
  %1225 = vmatpush1.bf16.xpose.msra.mxu0 %v1187
  %1226 = vmatprep.subr.bf16.mxu0 0
  %1227 = vmatpush2.bf16.xpose.msra.mxu0 0
  %1228 = vmatprep.subr.bf16.mxu0 0
  %1229 = vmatpush2.bf16.xpose.msra.mxu0 0
  %1230 = vmatprep.subr.bf16.mxu0 0
  %1231 = vmatpush2.bf16.xpose.msra.mxu0 0
  %1232 = vmatprep.subr.bf16.mxu0 0
  %1233 = vmatpush2.bf16.xpose.msra.mxu0 0
  %1234 = vmatprep.subr.bf16.mxu0 0
  %1235 = vmatpush2.bf16.xpose.msra.mxu0 0
  %1236 = vmatprep.subr.bf16.mxu0 0
  %1237 = vmatpush2.bf16.xpose.msra.mxu0 0
  %1238 = vmatprep.subr.bf16.mxu0 0
  %1239 = vmatpush2.bf16.xpose.msra.mxu0 0
  %1240 = vmatprep.subr.bf16.mxu0 0
  %1241 = vmatpush2.bf16.xpose.msra.mxu0 0
  %1242 = vmatprep.mubr.bf16.mxu0 0
  %1243 = vmatmul.mubr.bf16.gmra.mxu0 %v1184
  %v1244 = vpop.f32.mrf.mxu0
  %v1245 = vadd.f32 0.0, %v1244
  %v1246 = vpop.f32.mrf.mxu0
  %v1247 = vpop.f32.mrf.mxu0
  %v1248 = vpop.f32.mrf.mxu0
  %1249 = vdwg.mxu0
  %s1250 = scalar_lea.vmem %s3, 16
  %1251 = vst [vmem:[%s1250] sm:$0xff] %v1245
  %s1252 = scalar_lea.vmem %s0, 84
  %v1253 = vld [vmem:[%s1252] sm:$0xff]
  %v1254 = vld [vmem:[%s1252 + $0x8] sm:$0xff]
  %v1255 = vld [vmem:[%s1252 + $0x10] sm:$0xff]
  %v1256 = vld [vmem:[%s1252 + $0x18] sm:$0xf]
  %s1257 = scalar_lea.vmem %s1, 336
  %v1258 = vld [vmem:[%s1257] sm:$0xff]
  %v1259 = vld [vmem:[%s1257 + $0x8] sm:$0xff]
  %v1260 = vld [vmem:[%s1257 + $0x10] sm:$0xff]
  %v1261 = vld [vmem:[%s1257 + $0x18] sm:$0xf]
  %v1262 = vld [vmem:[%s1257 + $0x1c] sm:$0xff]
  %v1263 = vld [vmem:[%s1257 + $0x24] sm:$0xff]
  %v1264 = vld [vmem:[%s1257 + $0x2c] sm:$0xff]
  %v1265 = vld [vmem:[%s1257 + $0x34] sm:$0xf]
  %v1266 = vld [vmem:[%s1257 + $0x38] sm:$0xff]
  %v1267 = vld [vmem:[%s1257 + $0x40] sm:$0xff]
  %v1268 = vld [vmem:[%s1257 + $0x48] sm:$0xff]
  %v1269 = vld [vmem:[%s1257 + $0x50] sm:$0xf]
  %v1270 = vld [vmem:[%s1257 + $0x54] sm:$0xff]
  %v1271 = vld [vmem:[%s1257 + $0x5c] sm:$0xff]
  %v1272 = vld [vmem:[%s1257 + $0x64] sm:$0xff]
  %v1273 = vld [vmem:[%s1257 + $0x6c] sm:$0xf]
  %v1278 = vunpack.c.l.b16 %v1253
  %v1279 = vunpack.c.h.b16 %v1253
  %v1280 = vunpack.c.l.b16 %v1254
  %v1281 = vunpack.c.h.b16 %v1254
  %v1282 = vunpack.c.l.b16 %v1255
  %v1283 = vunpack.c.h.b16 %v1255
  %v1284 = vunpack.c.l.b16 %v1256
  %v1285 = vpack.c.b16 %v1278, %v1278
  %v1286 = vpack.c.b16 %v1279, %v1279
  %v1287 = vpack.c.b16 %v1280, %v1280
  %v1288 = vpack.c.b16 %v1281, %v1281
  %v1289 = vpack.c.b16 %v1282, %v1282
  %v1290 = vpack.c.b16 %v1283, %v1283
  %v1291 = vpack.c.b16 %v1284, %v1284
  %v1314 = vunpack.c.l.b16 %v1258
  %v1315 = vunpack.c.h.b16 %v1258
  %v1316 = vunpack.c.l.b16 %v1259
  %v1317 = vunpack.c.h.b16 %v1259
  %v1318 = vunpack.c.l.b16 %v1260
  %v1319 = vunpack.c.h.b16 %v1260
  %v1320 = vunpack.c.l.b16 %v1261
  %v1321 = vunpack.c.l.b16 %v1262
  %v1322 = vunpack.c.h.b16 %v1262
  %v1323 = vunpack.c.l.b16 %v1263
  %v1324 = vunpack.c.h.b16 %v1263
  %v1325 = vunpack.c.l.b16 %v1264
  %v1326 = vunpack.c.h.b16 %v1264
  %v1327 = vunpack.c.l.b16 %v1265
  %v1328 = vunpack.c.l.b16 %v1266
  %v1329 = vunpack.c.h.b16 %v1266
  %v1330 = vunpack.c.l.b16 %v1267
  %v1331 = vunpack.c.h.b16 %v1267
  %v1332 = vunpack.c.l.b16 %v1268
  %v1333 = vunpack.c.h.b16 %v1268
  %v1334 = vunpack.c.l.b16 %v1269
  %v1335 = vunpack.c.l.b16 %v1270
  %v1336 = vunpack.c.h.b16 %v1270
  %v1337 = vunpack.c.l.b16 %v1271
  %v1338 = vunpack.c.h.b16 %v1271
  %v1339 = vunpack.c.l.b16 %v1272
  %v1340 = vunpack.c.h.b16 %v1272
  %v1341 = vunpack.c.l.b16 %v1273
  %v1342 = vpack.c.b16 %v1321, %v1314
  %v1343 = vpack.c.b16 %v1322, %v1315
  %v1344 = vpack.c.b16 %v1323, %v1316
  %v1345 = vpack.c.b16 %v1324, %v1317
  %v1346 = vpack.c.b16 %v1325, %v1318
  %v1347 = vpack.c.b16 %v1326, %v1319
  %v1348 = vpack.c.b16 %v1327, %v1320
  %v1349 = vpack.c.b16 %v1335, %v1328
  %v1350 = vpack.c.b16 %v1336, %v1329
  %v1351 = vpack.c.b16 %v1337, %v1330
  %v1352 = vpack.c.b16 %v1338, %v1331
  %v1353 = vpack.c.b16 %v1339, %v1332
  %v1354 = vpack.c.b16 %v1340, %v1333
  %v1355 = vpack.c.b16 %v1341, %v1334
  %v1369 = vsel %vm129, %v1291, 0
  %v1372 = vsel %vm129, %v1348, 0
  %v1375 = vsel %vm129, %v1355, 0
  %1377 = vmatprep.subr.bf16.mxu0 0
  %1378 = vmatpush1.bf16.xpose.msra.mxu0 0
  %1379 = vmatprep.subr.bf16.mxu0 0
  %1380 = vmatpush1.bf16.xpose.msra.mxu0 0
  %1381 = vmatprep.subr.bf16.mxu0 0
  %1382 = vmatpush1.bf16.xpose.msra.mxu0 0
  %1383 = vmatprep.subr.bf16.mxu0 0
  %1384 = vmatpush1.bf16.xpose.msra.mxu0 0
  %1385 = vmatprep.subr.bf16.mxu0 0
  %1386 = vmatpush1.bf16.xpose.msra.mxu0 0
  %1387 = vmatprep.subr.bf16.mxu0 0
  %1388 = vmatpush1.bf16.xpose.msra.mxu0 0
  %1389 = vmatprep.subr.bf16.mxu0 %v1350
  %1390 = vmatpush1.bf16.xpose.msra.mxu0 %v1349
  %1391 = vmatprep.subr.bf16.mxu0 %v1343
  %1392 = vmatpush1.bf16.xpose.msra.mxu0 %v1342
  %1393 = vmatprep.subr.bf16.mxu0 0
  %1394 = vmatpush2.bf16.xpose.msra.mxu0 0
  %1395 = vmatprep.subr.bf16.mxu0 0
  %1396 = vmatpush2.bf16.xpose.msra.mxu0 0
  %1397 = vmatprep.subr.bf16.mxu0 0
  %1398 = vmatpush2.bf16.xpose.msra.mxu0 0
  %1399 = vmatprep.subr.bf16.mxu0 0
  %1400 = vmatpush2.bf16.xpose.msra.mxu0 0
  %1401 = vmatprep.subr.bf16.mxu0 0
  %1402 = vmatpush2.bf16.xpose.msra.mxu0 0
  %1403 = vmatprep.subr.bf16.mxu0 0
  %1404 = vmatpush2.bf16.xpose.msra.mxu0 0
  %1405 = vmatprep.subr.bf16.mxu0 0
  %1406 = vmatpush2.bf16.xpose.msra.mxu0 0
  %1407 = vmatprep.subr.bf16.mxu0 0
  %1408 = vmatpush2.bf16.xpose.msra.mxu0 0
  %1409 = vmatprep.mubr.bf16.mxu0 %v1286
  %1410 = vmatmul.mubr.bf16.gmra.mxu0 %v1285
  %v1411 = vpop.f32.mrf.mxu0
  %v1412 = vadd.f32 0.0, %v1411
  %v1413 = vpop.f32.mrf.mxu0
  %v1414 = vpop.f32.mrf.mxu0
  %v1415 = vpop.f32.mrf.mxu0
  %1416 = vdwg.mxu0
  %1417 = vmatprep.subr.bf16.mxu0 0
  %1418 = vmatpush1.bf16.xpose.msra.mxu0 0
  %1419 = vmatprep.subr.bf16.mxu0 0
  %1420 = vmatpush1.bf16.xpose.msra.mxu0 0
  %1421 = vmatprep.subr.bf16.mxu0 0
  %1422 = vmatpush1.bf16.xpose.msra.mxu0 0
  %1423 = vmatprep.subr.bf16.mxu0 0
  %1424 = vmatpush1.bf16.xpose.msra.mxu0 0
  %1425 = vmatprep.subr.bf16.mxu0 0
  %1426 = vmatpush1.bf16.xpose.msra.mxu0 0
  %1427 = vmatprep.subr.bf16.mxu0 0
  %1428 = vmatpush1.bf16.xpose.msra.mxu0 0
  %1429 = vmatprep.subr.bf16.mxu0 %v1352
  %1430 = vmatpush1.bf16.xpose.msra.mxu0 %v1351
  %1431 = vmatprep.subr.bf16.mxu0 %v1345
  %1432 = vmatpush1.bf16.xpose.msra.mxu0 %v1344
  %1433 = vmatprep.subr.bf16.mxu0 0
  %1434 = vmatpush2.bf16.xpose.msra.mxu0 0
  %1435 = vmatprep.subr.bf16.mxu0 0
  %1436 = vmatpush2.bf16.xpose.msra.mxu0 0
  %1437 = vmatprep.subr.bf16.mxu0 0
  %1438 = vmatpush2.bf16.xpose.msra.mxu0 0
  %1439 = vmatprep.subr.bf16.mxu0 0
  %1440 = vmatpush2.bf16.xpose.msra.mxu0 0
  %1441 = vmatprep.subr.bf16.mxu0 0
  %1442 = vmatpush2.bf16.xpose.msra.mxu0 0
  %1443 = vmatprep.subr.bf16.mxu0 0
  %1444 = vmatpush2.bf16.xpose.msra.mxu0 0
  %1445 = vmatprep.subr.bf16.mxu0 0
  %1446 = vmatpush2.bf16.xpose.msra.mxu0 0
  %1447 = vmatprep.subr.bf16.mxu0 0
  %1448 = vmatpush2.bf16.xpose.msra.mxu0 0
  %1449 = vmatprep.mubr.bf16.mxu0 %v1288
  %1450 = vmatmul.mubr.bf16.gmra.mxu0 %v1287
  %v1451 = vpop.f32.mrf.mxu0
  %v1452 = vadd.f32 %v1412, %v1451
  %v1453 = vpop.f32.mrf.mxu0
  %v1454 = vpop.f32.mrf.mxu0
  %v1455 = vpop.f32.mrf.mxu0
  %1456 = vdwg.mxu0
  %1457 = vmatprep.subr.bf16.mxu0 0
  %1458 = vmatpush1.bf16.xpose.msra.mxu0 0
  %1459 = vmatprep.subr.bf16.mxu0 0
  %1460 = vmatpush1.bf16.xpose.msra.mxu0 0
  %1461 = vmatprep.subr.bf16.mxu0 0
  %1462 = vmatpush1.bf16.xpose.msra.mxu0 0
  %1463 = vmatprep.subr.bf16.mxu0 0
  %1464 = vmatpush1.bf16.xpose.msra.mxu0 0
  %1465 = vmatprep.subr.bf16.mxu0 0
  %1466 = vmatpush1.bf16.xpose.msra.mxu0 0
  %1467 = vmatprep.subr.bf16.mxu0 0
  %1468 = vmatpush1.bf16.xpose.msra.mxu0 0
  %1469 = vmatprep.subr.bf16.mxu0 %v1354
  %1470 = vmatpush1.bf16.xpose.msra.mxu0 %v1353
  %1471 = vmatprep.subr.bf16.mxu0 %v1347
  %1472 = vmatpush1.bf16.xpose.msra.mxu0 %v1346
  %1473 = vmatprep.subr.bf16.mxu0 0
  %1474 = vmatpush2.bf16.xpose.msra.mxu0 0
  %1475 = vmatprep.subr.bf16.mxu0 0
  %1476 = vmatpush2.bf16.xpose.msra.mxu0 0
  %1477 = vmatprep.subr.bf16.mxu0 0
  %1478 = vmatpush2.bf16.xpose.msra.mxu0 0
  %1479 = vmatprep.subr.bf16.mxu0 0
  %1480 = vmatpush2.bf16.xpose.msra.mxu0 0
  %1481 = vmatprep.subr.bf16.mxu0 0
  %1482 = vmatpush2.bf16.xpose.msra.mxu0 0
  %1483 = vmatprep.subr.bf16.mxu0 0
  %1484 = vmatpush2.bf16.xpose.msra.mxu0 0
  %1485 = vmatprep.subr.bf16.mxu0 0
  %1486 = vmatpush2.bf16.xpose.msra.mxu0 0
  %1487 = vmatprep.subr.bf16.mxu0 0
  %1488 = vmatpush2.bf16.xpose.msra.mxu0 0
  %1489 = vmatprep.mubr.bf16.mxu0 %v1290
  %1490 = vmatmul.mubr.bf16.gmra.mxu0 %v1289
  %v1491 = vpop.f32.mrf.mxu0
  %v1492 = vadd.f32 %v1452, %v1491
  %v1493 = vpop.f32.mrf.mxu0
  %v1494 = vpop.f32.mrf.mxu0
  %v1495 = vpop.f32.mrf.mxu0
  %1496 = vdwg.mxu0
  %1497 = vmatprep.subr.bf16.mxu0 0
  %1498 = vmatpush1.bf16.xpose.msra.mxu0 0
  %1499 = vmatprep.subr.bf16.mxu0 0
  %1500 = vmatpush1.bf16.xpose.msra.mxu0 0
  %1501 = vmatprep.subr.bf16.mxu0 0
  %1502 = vmatpush1.bf16.xpose.msra.mxu0 0
  %1503 = vmatprep.subr.bf16.mxu0 0
  %1504 = vmatpush1.bf16.xpose.msra.mxu0 0
  %1505 = vmatprep.subr.bf16.mxu0 0
  %1506 = vmatpush1.bf16.xpose.msra.mxu0 0
  %1507 = vmatprep.subr.bf16.mxu0 0
  %1508 = vmatpush1.bf16.xpose.msra.mxu0 0
  %1509 = vmatprep.subr.bf16.mxu0 0
  %1510 = vmatpush1.bf16.xpose.msra.mxu0 %v1375
  %1511 = vmatprep.subr.bf16.mxu0 0
  %1512 = vmatpush1.bf16.xpose.msra.mxu0 %v1372
  %1513 = vmatprep.subr.bf16.mxu0 0
  %1514 = vmatpush2.bf16.xpose.msra.mxu0 0
  %1515 = vmatprep.subr.bf16.mxu0 0
  %1516 = vmatpush2.bf16.xpose.msra.mxu0 0
  %1517 = vmatprep.subr.bf16.mxu0 0
  %1518 = vmatpush2.bf16.xpose.msra.mxu0 0
  %1519 = vmatprep.subr.bf16.mxu0 0
  %1520 = vmatpush2.bf16.xpose.msra.mxu0 0
  %1521 = vmatprep.subr.bf16.mxu0 0
  %1522 = vmatpush2.bf16.xpose.msra.mxu0 0
  %1523 = vmatprep.subr.bf16.mxu0 0
  %1524 = vmatpush2.bf16.xpose.msra.mxu0 0
  %1525 = vmatprep.subr.bf16.mxu0 0
  %1526 = vmatpush2.bf16.xpose.msra.mxu0 0
  %1527 = vmatprep.subr.bf16.mxu0 0
  %1528 = vmatpush2.bf16.xpose.msra.mxu0 0
  %1529 = vmatprep.mubr.bf16.mxu0 0
  %1530 = vmatmul.mubr.bf16.gmra.mxu0 %v1369
  %v1531 = vpop.f32.mrf.mxu0
  %v1532 = vadd.f32 %v1492, %v1531
  %v1533 = vpop.f32.mrf.mxu0
  %v1534 = vpop.f32.mrf.mxu0
  %v1535 = vpop.f32.mrf.mxu0
  %1536 = vdwg.mxu0
  %v1537 = vmax.f32 %v1532, 0.0
  %v1538 = vpack.c.bf16 %v1537, %v1537
  %s1539 = scalar_lea.vmem %s2, 192
  %v1540 = vld [vmem:[%s1539] sm:$0xf]
  %v1541 = vld [vmem:[%s1539 + $0x4] sm:$0xf]
  %v1542 = vld [vmem:[%s1539 + $0x8] sm:$0xf]
  %v1543 = vld [vmem:[%s1539 + $0xc] sm:$0xf]
  %v1544 = vld [vmem:[%s1539 + $0x10] sm:$0xf]
  %v1545 = vld [vmem:[%s1539 + $0x14] sm:$0xf]
  %v1546 = vld [vmem:[%s1539 + $0x18] sm:$0xf]
  %v1547 = vld [vmem:[%s1539 + $0x1c] sm:$0xf]
  %v1548 = vld [vmem:[%s1539 + $0x20] sm:$0xf]
  %v1549 = vld [vmem:[%s1539 + $0x24] sm:$0xf]
  %v1550 = vld [vmem:[%s1539 + $0x28] sm:$0xf]
  %v1551 = vld [vmem:[%s1539 + $0x2c] sm:$0xf]
  %v1552 = vld [vmem:[%s1539 + $0x30] sm:$0xf]
  %v1553 = vld [vmem:[%s1539 + $0x34] sm:$0xf]
  %v1554 = vld [vmem:[%s1539 + $0x38] sm:$0xf]
  %v1555 = vld [vmem:[%s1539 + $0x3c] sm:$0xf]
  %v1572 = vunpack.c.l.b16 %v1540
  %v1573 = vunpack.c.l.b16 %v1541
  %v1574 = vunpack.c.l.b16 %v1542
  %v1575 = vunpack.c.l.b16 %v1543
  %v1576 = vunpack.c.l.b16 %v1544
  %v1577 = vunpack.c.l.b16 %v1545
  %v1578 = vunpack.c.l.b16 %v1546
  %v1579 = vunpack.c.l.b16 %v1547
  %v1580 = vunpack.c.l.b16 %v1548
  %v1581 = vunpack.c.l.b16 %v1549
  %v1582 = vunpack.c.l.b16 %v1550
  %v1583 = vunpack.c.l.b16 %v1551
  %v1584 = vunpack.c.l.b16 %v1552
  %v1585 = vunpack.c.l.b16 %v1553
  %v1586 = vunpack.c.l.b16 %v1554
  %v1587 = vunpack.c.l.b16 %v1555
  %v1588 = vpack.c.b16 %v1573, %v1572
  %v1589 = vpack.c.b16 %v1575, %v1574
  %v1590 = vpack.c.b16 %v1577, %v1576
  %v1591 = vpack.c.b16 %v1579, %v1578
  %v1592 = vpack.c.b16 %v1581, %v1580
  %v1593 = vpack.c.b16 %v1583, %v1582
  %v1594 = vpack.c.b16 %v1585, %v1584
  %v1595 = vpack.c.b16 %v1587, %v1586
  %v1597 = vsel %vm357, %v1538, 0
  %v1600 = vsel %vm357, %v1588, 0
  %v1603 = vsel %vm357, %v1589, 0
  %v1606 = vsel %vm357, %v1590, 0
  %v1609 = vsel %vm357, %v1591, 0
  %v1612 = vsel %vm357, %v1592, 0
  %v1615 = vsel %vm357, %v1593, 0
  %v1618 = vsel %vm357, %v1594, 0
  %v1621 = vsel %vm357, %v1595, 0
  %1623 = vmatprep.subr.bf16.mxu0 0
  %1624 = vmatpush1.bf16.xpose.msra.mxu0 %v1621
  %1625 = vmatprep.subr.bf16.mxu0 0
  %1626 = vmatpush1.bf16.xpose.msra.mxu0 %v1618
  %1627 = vmatprep.subr.bf16.mxu0 0
  %1628 = vmatpush1.bf16.xpose.msra.mxu0 %v1615
  %1629 = vmatprep.subr.bf16.mxu0 0
  %1630 = vmatpush1.bf16.xpose.msra.mxu0 %v1612
  %1631 = vmatprep.subr.bf16.mxu0 0
  %1632 = vmatpush1.bf16.xpose.msra.mxu0 %v1609
  %1633 = vmatprep.subr.bf16.mxu0 0
  %1634 = vmatpush1.bf16.xpose.msra.mxu0 %v1606
  %1635 = vmatprep.subr.bf16.mxu0 0
  %1636 = vmatpush1.bf16.xpose.msra.mxu0 %v1603
  %1637 = vmatprep.subr.bf16.mxu0 0
  %1638 = vmatpush1.bf16.xpose.msra.mxu0 %v1600
  %1639 = vmatprep.subr.bf16.mxu0 0
  %1640 = vmatpush2.bf16.xpose.msra.mxu0 0
  %1641 = vmatprep.subr.bf16.mxu0 0
  %1642 = vmatpush2.bf16.xpose.msra.mxu0 0
  %1643 = vmatprep.subr.bf16.mxu0 0
  %1644 = vmatpush2.bf16.xpose.msra.mxu0 0
  %1645 = vmatprep.subr.bf16.mxu0 0
  %1646 = vmatpush2.bf16.xpose.msra.mxu0 0
  %1647 = vmatprep.subr.bf16.mxu0 0
  %1648 = vmatpush2.bf16.xpose.msra.mxu0 0
  %1649 = vmatprep.subr.bf16.mxu0 0
  %1650 = vmatpush2.bf16.xpose.msra.mxu0 0
  %1651 = vmatprep.subr.bf16.mxu0 0
  %1652 = vmatpush2.bf16.xpose.msra.mxu0 0
  %1653 = vmatprep.subr.bf16.mxu0 0
  %1654 = vmatpush2.bf16.xpose.msra.mxu0 0
  %1655 = vmatprep.mubr.bf16.mxu0 0
  %1656 = vmatmul.mubr.bf16.gmra.mxu0 %v1597
  %v1657 = vpop.f32.mrf.mxu0
  %v1658 = vadd.f32 0.0, %v1657
  %v1659 = vpop.f32.mrf.mxu0
  %v1660 = vpop.f32.mrf.mxu0
  %v1661 = vpop.f32.mrf.mxu0
  %1662 = vdwg.mxu0
  %s1663 = scalar_lea.vmem %s3, 24
  %1664 = vst [vmem:[%s1663] sm:$0xff] %v1658
  %s1665 = scalar_lea.vmem %s0, 112
  %v1666 = vld [vmem:[%s1665] sm:$0xff]
  %v1667 = vld [vmem:[%s1665 + $0x8] sm:$0xff]
  %v1668 = vld [vmem:[%s1665 + $0x10] sm:$0xff]
  %v1669 = vld [vmem:[%s1665 + $0x18] sm:$0xf]
  %s1670 = scalar_lea.vmem %s1, 448
  %v1671 = vld [vmem:[%s1670] sm:$0xff]
  %v1672 = vld [vmem:[%s1670 + $0x8] sm:$0xff]
  %v1673 = vld [vmem:[%s1670 + $0x10] sm:$0xff]
  %v1674 = vld [vmem:[%s1670 + $0x18] sm:$0xf]
  %v1675 = vld [vmem:[%s1670 + $0x1c] sm:$0xff]
  %v1676 = vld [vmem:[%s1670 + $0x24] sm:$0xff]
  %v1677 = vld [vmem:[%s1670 + $0x2c] sm:$0xff]
  %v1678 = vld [vmem:[%s1670 + $0x34] sm:$0xf]
  %v1679 = vld [vmem:[%s1670 + $0x38] sm:$0xff]
  %v1680 = vld [vmem:[%s1670 + $0x40] sm:$0xff]
  %v1681 = vld [vmem:[%s1670 + $0x48] sm:$0xff]
  %v1682 = vld [vmem:[%s1670 + $0x50] sm:$0xf]
  %v1683 = vld [vmem:[%s1670 + $0x54] sm:$0xff]
  %v1684 = vld [vmem:[%s1670 + $0x5c] sm:$0xff]
  %v1685 = vld [vmem:[%s1670 + $0x64] sm:$0xff]
  %v1686 = vld [vmem:[%s1670 + $0x6c] sm:$0xf]
  %v1691 = vunpack.c.l.b16 %v1666
  %v1692 = vunpack.c.h.b16 %v1666
  %v1693 = vunpack.c.l.b16 %v1667
  %v1694 = vunpack.c.h.b16 %v1667
  %v1695 = vunpack.c.l.b16 %v1668
  %v1696 = vunpack.c.h.b16 %v1668
  %v1697 = vunpack.c.l.b16 %v1669
  %v1698 = vpack.c.b16 %v1691, %v1691
  %v1699 = vpack.c.b16 %v1692, %v1692
  %v1700 = vpack.c.b16 %v1693, %v1693
  %v1701 = vpack.c.b16 %v1694, %v1694
  %v1702 = vpack.c.b16 %v1695, %v1695
  %v1703 = vpack.c.b16 %v1696, %v1696
  %v1704 = vpack.c.b16 %v1697, %v1697
  %v1727 = vunpack.c.l.b16 %v1671
  %v1728 = vunpack.c.h.b16 %v1671
  %v1729 = vunpack.c.l.b16 %v1672
  %v1730 = vunpack.c.h.b16 %v1672
  %v1731 = vunpack.c.l.b16 %v1673
  %v1732 = vunpack.c.h.b16 %v1673
  %v1733 = vunpack.c.l.b16 %v1674
  %v1734 = vunpack.c.l.b16 %v1675
  %v1735 = vunpack.c.h.b16 %v1675
  %v1736 = vunpack.c.l.b16 %v1676
  %v1737 = vunpack.c.h.b16 %v1676
  %v1738 = vunpack.c.l.b16 %v1677
  %v1739 = vunpack.c.h.b16 %v1677
  %v1740 = vunpack.c.l.b16 %v1678
  %v1741 = vunpack.c.l.b16 %v1679
  %v1742 = vunpack.c.h.b16 %v1679
  %v1743 = vunpack.c.l.b16 %v1680
  %v1744 = vunpack.c.h.b16 %v1680
  %v1745 = vunpack.c.l.b16 %v1681
  %v1746 = vunpack.c.h.b16 %v1681
  %v1747 = vunpack.c.l.b16 %v1682
  %v1748 = vunpack.c.l.b16 %v1683
  %v1749 = vunpack.c.h.b16 %v1683
  %v1750 = vunpack.c.l.b16 %v1684
  %v1751 = vunpack.c.h.b16 %v1684
  %v1752 = vunpack.c.l.b16 %v1685
  %v1753 = vunpack.c.h.b16 %v1685
  %v1754 = vunpack.c.l.b16 %v1686
  %v1755 = vpack.c.b16 %v1734, %v1727
  %v1756 = vpack.c.b16 %v1735, %v1728
  %v1757 = vpack.c.b16 %v1736, %v1729
  %v1758 = vpack.c.b16 %v1737, %v1730
  %v1759 = vpack.c.b16 %v1738, %v1731
  %v1760 = vpack.c.b16 %v1739, %v1732
  %v1761 = vpack.c.b16 %v1740, %v1733
  %v1762 = vpack.c.b16 %v1748, %v1741
  %v1763 = vpack.c.b16 %v1749, %v1742
  %v1764 = vpack.c.b16 %v1750, %v1743
  %v1765 = vpack.c.b16 %v1751, %v1744
  %v1766 = vpack.c.b16 %v1752, %v1745
  %v1767 = vpack.c.b16 %v1753, %v1746
  %v1768 = vpack.c.b16 %v1754, %v1747
  %v1782 = vsel %vm129, %v1704, 0
  %v1785 = vsel %vm129, %v1761, 0
  %v1788 = vsel %vm129, %v1768, 0
  %1790 = vmatprep.subr.bf16.mxu0 0
  %1791 = vmatpush1.bf16.xpose.msra.mxu0 0
  %1792 = vmatprep.subr.bf16.mxu0 0
  %1793 = vmatpush1.bf16.xpose.msra.mxu0 0
  %1794 = vmatprep.subr.bf16.mxu0 0
  %1795 = vmatpush1.bf16.xpose.msra.mxu0 0
  %1796 = vmatprep.subr.bf16.mxu0 0
  %1797 = vmatpush1.bf16.xpose.msra.mxu0 0
  %1798 = vmatprep.subr.bf16.mxu0 0
  %1799 = vmatpush1.bf16.xpose.msra.mxu0 0
  %1800 = vmatprep.subr.bf16.mxu0 0
  %1801 = vmatpush1.bf16.xpose.msra.mxu0 0
  %1802 = vmatprep.subr.bf16.mxu0 %v1763
  %1803 = vmatpush1.bf16.xpose.msra.mxu0 %v1762
  %1804 = vmatprep.subr.bf16.mxu0 %v1756
  %1805 = vmatpush1.bf16.xpose.msra.mxu0 %v1755
  %1806 = vmatprep.subr.bf16.mxu0 0
  %1807 = vmatpush2.bf16.xpose.msra.mxu0 0
  %1808 = vmatprep.subr.bf16.mxu0 0
  %1809 = vmatpush2.bf16.xpose.msra.mxu0 0
  %1810 = vmatprep.subr.bf16.mxu0 0
  %1811 = vmatpush2.bf16.xpose.msra.mxu0 0
  %1812 = vmatprep.subr.bf16.mxu0 0
  %1813 = vmatpush2.bf16.xpose.msra.mxu0 0
  %1814 = vmatprep.subr.bf16.mxu0 0
  %1815 = vmatpush2.bf16.xpose.msra.mxu0 0
  %1816 = vmatprep.subr.bf16.mxu0 0
  %1817 = vmatpush2.bf16.xpose.msra.mxu0 0
  %1818 = vmatprep.subr.bf16.mxu0 0
  %1819 = vmatpush2.bf16.xpose.msra.mxu0 0
  %1820 = vmatprep.subr.bf16.mxu0 0
  %1821 = vmatpush2.bf16.xpose.msra.mxu0 0
  %1822 = vmatprep.mubr.bf16.mxu0 %v1699
  %1823 = vmatmul.mubr.bf16.gmra.mxu0 %v1698
  %v1824 = vpop.f32.mrf.mxu0
  %v1825 = vadd.f32 0.0, %v1824
  %v1826 = vpop.f32.mrf.mxu0
  %v1827 = vpop.f32.mrf.mxu0
  %v1828 = vpop.f32.mrf.mxu0
  %1829 = vdwg.mxu0
  %1830 = vmatprep.subr.bf16.mxu0 0
  %1831 = vmatpush1.bf16.xpose.msra.mxu0 0
  %1832 = vmatprep.subr.bf16.mxu0 0
  %1833 = vmatpush1.bf16.xpose.msra.mxu0 0
  %1834 = vmatprep.subr.bf16.mxu0 0
  %1835 = vmatpush1.bf16.xpose.msra.mxu0 0
  %1836 = vmatprep.subr.bf16.mxu0 0
  %1837 = vmatpush1.bf16.xpose.msra.mxu0 0
  %1838 = vmatprep.subr.bf16.mxu0 0
  %1839 = vmatpush1.bf16.xpose.msra.mxu0 0
  %1840 = vmatprep.subr.bf16.mxu0 0
  %1841 = vmatpush1.bf16.xpose.msra.mxu0 0
  %1842 = vmatprep.subr.bf16.mxu0 %v1765
  %1843 = vmatpush1.bf16.xpose.msra.mxu0 %v1764
  %1844 = vmatprep.subr.bf16.mxu0 %v1758
  %1845 = vmatpush1.bf16.xpose.msra.mxu0 %v1757
  %1846 = vmatprep.subr.bf16.mxu0 0
  %1847 = vmatpush2.bf16.xpose.msra.mxu0 0
  %1848 = vmatprep.subr.bf16.mxu0 0
  %1849 = vmatpush2.bf16.xpose.msra.mxu0 0
  %1850 = vmatprep.subr.bf16.mxu0 0
  %1851 = vmatpush2.bf16.xpose.msra.mxu0 0
  %1852 = vmatprep.subr.bf16.mxu0 0
  %1853 = vmatpush2.bf16.xpose.msra.mxu0 0
  %1854 = vmatprep.subr.bf16.mxu0 0
  %1855 = vmatpush2.bf16.xpose.msra.mxu0 0
  %1856 = vmatprep.subr.bf16.mxu0 0
  %1857 = vmatpush2.bf16.xpose.msra.mxu0 0
  %1858 = vmatprep.subr.bf16.mxu0 0
  %1859 = vmatpush2.bf16.xpose.msra.mxu0 0
  %1860 = vmatprep.subr.bf16.mxu0 0
  %1861 = vmatpush2.bf16.xpose.msra.mxu0 0
  %1862 = vmatprep.mubr.bf16.mxu0 %v1701
  %1863 = vmatmul.mubr.bf16.gmra.mxu0 %v1700
  %v1864 = vpop.f32.mrf.mxu0
  %v1865 = vadd.f32 %v1825, %v1864
  %v1866 = vpop.f32.mrf.mxu0
  %v1867 = vpop.f32.mrf.mxu0
  %v1868 = vpop.f32.mrf.mxu0
  %1869 = vdwg.mxu0
  %1870 = vmatprep.subr.bf16.mxu0 0
  %1871 = vmatpush1.bf16.xpose.msra.mxu0 0
  %1872 = vmatprep.subr.bf16.mxu0 0
  %1873 = vmatpush1.bf16.xpose.msra.mxu0 0
  %1874 = vmatprep.subr.bf16.mxu0 0
  %1875 = vmatpush1.bf16.xpose.msra.mxu0 0
  %1876 = vmatprep.subr.bf16.mxu0 0
  %1877 = vmatpush1.bf16.xpose.msra.mxu0 0
  %1878 = vmatprep.subr.bf16.mxu0 0
  %1879 = vmatpush1.bf16.xpose.msra.mxu0 0
  %1880 = vmatprep.subr.bf16.mxu0 0
  %1881 = vmatpush1.bf16.xpose.msra.mxu0 0
  %1882 = vmatprep.subr.bf16.mxu0 %v1767
  %1883 = vmatpush1.bf16.xpose.msra.mxu0 %v1766
  %1884 = vmatprep.subr.bf16.mxu0 %v1760
  %1885 = vmatpush1.bf16.xpose.msra.mxu0 %v1759
  %1886 = vmatprep.subr.bf16.mxu0 0
  %1887 = vmatpush2.bf16.xpose.msra.mxu0 0
  %1888 = vmatprep.subr.bf16.mxu0 0
  %1889 = vmatpush2.bf16.xpose.msra.mxu0 0
  %1890 = vmatprep.subr.bf16.mxu0 0
  %1891 = vmatpush2.bf16.xpose.msra.mxu0 0
  %1892 = vmatprep.subr.bf16.mxu0 0
  %1893 = vmatpush2.bf16.xpose.msra.mxu0 0
  %1894 = vmatprep.subr.bf16.mxu0 0
  %1895 = vmatpush2.bf16.xpose.msra.mxu0 0
  %1896 = vmatprep.subr.bf16.mxu0 0
  %1897 = vmatpush2.bf16.xpose.msra.mxu0 0
  %1898 = vmatprep.subr.bf16.mxu0 0
  %1899 = vmatpush2.bf16.xpose.msra.mxu0 0
  %1900 = vmatprep.subr.bf16.mxu0 0
  %1901 = vmatpush2.bf16.xpose.msra.mxu0 0
  %1902 = vmatprep.mubr.bf16.mxu0 %v1703
  %1903 = vmatmul.mubr.bf16.gmra.mxu0 %v1702
  %v1904 = vpop.f32.mrf.mxu0
  %v1905 = vadd.f32 %v1865, %v1904
  %v1906 = vpop.f32.mrf.mxu0
  %v1907 = vpop.f32.mrf.mxu0
  %v1908 = vpop.f32.mrf.mxu0
  %1909 = vdwg.mxu0
  %1910 = vmatprep.subr.bf16.mxu0 0
  %1911 = vmatpush1.bf16.xpose.msra.mxu0 0
  %1912 = vmatprep.subr.bf16.mxu0 0
  %1913 = vmatpush1.bf16.xpose.msra.mxu0 0
  %1914 = vmatprep.subr.bf16.mxu0 0
  %1915 = vmatpush1.bf16.xpose.msra.mxu0 0
  %1916 = vmatprep.subr.bf16.mxu0 0
  %1917 = vmatpush1.bf16.xpose.msra.mxu0 0
  %1918 = vmatprep.subr.bf16.mxu0 0
  %1919 = vmatpush1.bf16.xpose.msra.mxu0 0
  %1920 = vmatprep.subr.bf16.mxu0 0
  %1921 = vmatpush1.bf16.xpose.msra.mxu0 0
  %1922 = vmatprep.subr.bf16.mxu0 0
  %1923 = vmatpush1.bf16.xpose.msra.mxu0 %v1788
  %1924 = vmatprep.subr.bf16.mxu0 0
  %1925 = vmatpush1.bf16.xpose.msra.mxu0 %v1785
  %1926 = vmatprep.subr.bf16.mxu0 0
  %1927 = vmatpush2.bf16.xpose.msra.mxu0 0
  %1928 = vmatprep.subr.bf16.mxu0 0
  %1929 = vmatpush2.bf16.xpose.msra.mxu0 0
  %1930 = vmatprep.subr.bf16.mxu0 0
  %1931 = vmatpush2.bf16.xpose.msra.mxu0 0
  %1932 = vmatprep.subr.bf16.mxu0 0
  %1933 = vmatpush2.bf16.xpose.msra.mxu0 0
  %1934 = vmatprep.subr.bf16.mxu0 0
  %1935 = vmatpush2.bf16.xpose.msra.mxu0 0
  %1936 = vmatprep.subr.bf16.mxu0 0
  %1937 = vmatpush2.bf16.xpose.msra.mxu0 0
  %1938 = vmatprep.subr.bf16.mxu0 0
  %1939 = vmatpush2.bf16.xpose.msra.mxu0 0
  %1940 = vmatprep.subr.bf16.mxu0 0
  %1941 = vmatpush2.bf16.xpose.msra.mxu0 0
  %1942 = vmatprep.mubr.bf16.mxu0 0
  %1943 = vmatmul.mubr.bf16.gmra.mxu0 %v1782
  %v1944 = vpop.f32.mrf.mxu0
  %v1945 = vadd.f32 %v1905, %v1944
  %v1946 = vpop.f32.mrf.mxu0
  %v1947 = vpop.f32.mrf.mxu0
  %v1948 = vpop.f32.mrf.mxu0
  %1949 = vdwg.mxu0
  %v1950 = vmax.f32 %v1945, 0.0
  %v1951 = vpack.c.bf16 %v1950, %v1950
  %s1952 = scalar_lea.vmem %s2, 256
  %v1953 = vld [vmem:[%s1952] sm:$0xf]
  %v1954 = vld [vmem:[%s1952 + $0x4] sm:$0xf]
  %v1955 = vld [vmem:[%s1952 + $0x8] sm:$0xf]
  %v1956 = vld [vmem:[%s1952 + $0xc] sm:$0xf]
  %v1957 = vld [vmem:[%s1952 + $0x10] sm:$0xf]
  %v1958 = vld [vmem:[%s1952 + $0x14] sm:$0xf]
  %v1959 = vld [vmem:[%s1952 + $0x18] sm:$0xf]
  %v1960 = vld [vmem:[%s1952 + $0x1c] sm:$0xf]
  %v1961 = vld [vmem:[%s1952 + $0x20] sm:$0xf]
  %v1962 = vld [vmem:[%s1952 + $0x24] sm:$0xf]
  %v1963 = vld [vmem:[%s1952 + $0x28] sm:$0xf]
  %v1964 = vld [vmem:[%s1952 + $0x2c] sm:$0xf]
  %v1965 = vld [vmem:[%s1952 + $0x30] sm:$0xf]
  %v1966 = vld [vmem:[%s1952 + $0x34] sm:$0xf]
  %v1967 = vld [vmem:[%s1952 + $0x38] sm:$0xf]
  %v1968 = vld [vmem:[%s1952 + $0x3c] sm:$0xf]
  %v1985 = vunpack.c.l.b16 %v1953
  %v1986 = vunpack.c.l.b16 %v1954
  %v1987 = vunpack.c.l.b16 %v1955
  %v1988 = vunpack.c.l.b16 %v1956
  %v1989 = vunpack.c.l.b16 %v1957
  %v1990 = vunpack.c.l.b16 %v1958
  %v1991 = vunpack.c.l.b16 %v1959
  %v1992 = vunpack.c.l.b16 %v1960
  %v1993 = vunpack.c.l.b16 %v1961
  %v1994 = vunpack.c.l.b16 %v1962
  %v1995 = vunpack.c.l.b16 %v1963
  %v1996 = vunpack.c.l.b16 %v1964
  %v1997 = vunpack.c.l.b16 %v1965
  %v1998 = vunpack.c.l.b16 %v1966
  %v1999 = vunpack.c.l.b16 %v1967
  %v2000 = vunpack.c.l.b16 %v1968
  %v2001 = vpack.c.b16 %v1986, %v1985
  %v2002 = vpack.c.b16 %v1988, %v1987
  %v2003 = vpack.c.b16 %v1990, %v1989
  %v2004 = vpack.c.b16 %v1992, %v1991
  %v2005 = vpack.c.b16 %v1994, %v1993
  %v2006 = vpack.c.b16 %v1996, %v1995
  %v2007 = vpack.c.b16 %v1998, %v1997
  %v2008 = vpack.c.b16 %v2000, %v1999
  %v2010 = vsel %vm357, %v1951, 0
  %v2013 = vsel %vm357, %v2001, 0
  %v2016 = vsel %vm357, %v2002, 0
  %v2019 = vsel %vm357, %v2003, 0
  %v2022 = vsel %vm357, %v2004, 0
  %v2025 = vsel %vm357, %v2005, 0
  %v2028 = vsel %vm357, %v2006, 0
  %v2031 = vsel %vm357, %v2007, 0
  %v2034 = vsel %vm357, %v2008, 0
  %2036 = vmatprep.subr.bf16.mxu0 0
  %2037 = vmatpush1.bf16.xpose.msra.mxu0 %v2034
  %2038 = vmatprep.subr.bf16.mxu0 0
  %2039 = vmatpush1.bf16.xpose.msra.mxu0 %v2031
  %2040 = vmatprep.subr.bf16.mxu0 0
  %2041 = vmatpush1.bf16.xpose.msra.mxu0 %v2028
  %2042 = vmatprep.subr.bf16.mxu0 0
  %2043 = vmatpush1.bf16.xpose.msra.mxu0 %v2025
  %2044 = vmatprep.subr.bf16.mxu0 0
  %2045 = vmatpush1.bf16.xpose.msra.mxu0 %v2022
  %2046 = vmatprep.subr.bf16.mxu0 0
  %2047 = vmatpush1.bf16.xpose.msra.mxu0 %v2019
  %2048 = vmatprep.subr.bf16.mxu0 0
  %2049 = vmatpush1.bf16.xpose.msra.mxu0 %v2016
  %2050 = vmatprep.subr.bf16.mxu0 0
  %2051 = vmatpush1.bf16.xpose.msra.mxu0 %v2013
  %2052 = vmatprep.subr.bf16.mxu0 0
  %2053 = vmatpush2.bf16.xpose.msra.mxu0 0
  %2054 = vmatprep.subr.bf16.mxu0 0
  %2055 = vmatpush2.bf16.xpose.msra.mxu0 0
  %2056 = vmatprep.subr.bf16.mxu0 0
  %2057 = vmatpush2.bf16.xpose.msra.mxu0 0
  %2058 = vmatprep.subr.bf16.mxu0 0
  %2059 = vmatpush2.bf16.xpose.msra.mxu0 0
  %2060 = vmatprep.subr.bf16.mxu0 0
  %2061 = vmatpush2.bf16.xpose.msra.mxu0 0
  %2062 = vmatprep.subr.bf16.mxu0 0
  %2063 = vmatpush2.bf16.xpose.msra.mxu0 0
  %2064 = vmatprep.subr.bf16.mxu0 0
  %2065 = vmatpush2.bf16.xpose.msra.mxu0 0
  %2066 = vmatprep.subr.bf16.mxu0 0
  %2067 = vmatpush2.bf16.xpose.msra.mxu0 0
  %2068 = vmatprep.mubr.bf16.mxu0 0
  %2069 = vmatmul.mubr.bf16.gmra.mxu0 %v2010
  %v2070 = vpop.f32.mrf.mxu0
  %v2071 = vadd.f32 0.0, %v2070
  %v2072 = vpop.f32.mrf.mxu0
  %v2073 = vpop.f32.mrf.mxu0
  %v2074 = vpop.f32.mrf.mxu0
  %2075 = vdwg.mxu0
  %s2076 = scalar_lea.vmem %s3, 32
  %2077 = vst [vmem:[%s2076] sm:$0xff] %v2071
  // Predicated region
  $region14: #{_evo_forward_impl.1} parent=0 // pred_check
    _
  $region15: #{_evo_forward_impl.1} parent=0 // pred_check_branch
    %2079 = sbr.rel (0) target = $region17
  $region16: #{_evo_forward_impl.1} parent=0 // pred_region
    _
  $region17: #{_evo_forward_impl.1} parent=0 // pred_fallthru
    _
  // Predicated region
  $region18: #{_evo_forward_impl.1} parent=0 // pred_check
    _
  $region19: #{_evo_forward_impl.1} parent=0 // pred_check_branch
    %2081 = sbr.rel (0) target = $region21
  $region20: #{_evo_forward_impl.1} parent=0 // pred_region
    _
  $region21: #{_evo_forward_impl.1} parent=0 // pred_fallthru
    _

</llo_original>
